<compile_context>
chip_gen: v5e
topology: v5e:2x2
jax: 0.10.0
libtpu: 0.0.40
codegen_flags: <defaults>
</compile_context>

<pallas_src>
import functools

import jax
import jax.numpy as jnp
from jax import lax
from jax.experimental import pallas as pl
from jax.experimental.pallas import tpu as pltpu


def _round_up(x, m):
    return ((x + m - 1) // m) * m


def _lstm_agg_kernel(neibs_ref, x_ref, w_ih_ref, w_hh_ref, b_ref,
                     w_x_ref, w_n_ref, out_ref):
    """One row-block of the aggregator, fully resident in VMEM.

    neibs_ref : (BN, T, D_in)    neighbor sequences for this row block
    x_ref     : (BN, D_in)
    w_ih_ref  : (D_in, 4H)       LSTM input->hidden, gate order (i,f,o,g)
    w_hh_ref  : (H, 4H)          LSTM hidden->hidden, gate order (i,f,o,g)
    b_ref     : (1, 4H)          b_ih + b_hh, gate order (i,f,o,g)
    w_x_ref   : (D_in, OUT_PAD)  fc_x^T placed in cols [0:D_out], rest 0
    w_n_ref   : (H, OUT_PAD)     fc_neib^T placed in cols [D_out:2*D_out]
    out_ref   : (BN, OUT_PAD)    lane-dense padded output
    """
    BN, T, D_in = neibs_ref.shape
    H = w_hh_ref.shape[0]

    # --- Hoisted input projection: one big MXU matmul for all timesteps. ---
    nb = neibs_ref[...].reshape(BN * T, D_in)
    g_in = jnp.dot(nb, w_ih_ref[...],
                   preferred_element_type=jnp.float32) + b_ref[...]
    g_in = g_in.reshape(BN, T, 4 * H)                       # (BN, T, 4H)

    w_hh = w_hh_ref[...]

    # --- Recurrence: (h, c) live in vregs; fully unrolled (T small/static). ---
    h = jnp.zeros((BN, H), jnp.float32)
    c = jnp.zeros((BN, H), jnp.float32)
    for t in range(T):
        gates = g_in[:, t, :] + jnp.dot(h, w_hh,
                                        preferred_element_type=jnp.float32)
        sig = jax.nn.sigmoid(gates[:, : 3 * H])             # i, f, o (contiguous)
        g_g = jnp.tanh(gates[:, 3 * H:])                    # g
        i_g = sig[:, :H]
        f_g = sig[:, H:2 * H]
        o_g = sig[:, 2 * H:3 * H]
        c = f_g * c + i_g * g_g
        h = o_g * jnp.tanh(c)

    # --- Fused output: relu(x @ Wx_pad + h @ Wn_pad), lane-dense store. ---
    out = (jnp.dot(x_ref[...], w_x_ref[...],
                   preferred_element_type=jnp.float32)
           + jnp.dot(h, w_n_ref[...],
                     preferred_element_type=jnp.float32))
    out_ref[...] = jnp.maximum(out, 0.0).astype(out_ref.dtype)


def prepare_lstm_agg_params(params):
    """One-time (outside the hot path) weight re-layout for the kernel."""
    H = params["w_hh"].shape[1]
    D_in = params["w_ih"].shape[1]
    D_out = params["w_fc_x"].shape[0]
    out_pad = _round_up(max(2 * D_out, 128), 128)

    def reorder(w):  # gate order (i,f,g,o) -> (i,f,o,g), split along axis 0
        i, f, g, o = jnp.split(w, 4, axis=0)
        return jnp.concatenate([i, f, o, g], axis=0)

    w_ih_t = reorder(params["w_ih"]).T.astype(jnp.float32)          # (D_in, 4H)
    w_hh_t = reorder(params["w_hh"]).T.astype(jnp.float32)          # (H, 4H)
    b = reorder(params["b_ih"] + params["b_hh"]).reshape(1, -1)     # (1, 4H)
    b = b.astype(jnp.float32)

    w_x_pad = jnp.zeros((D_in, out_pad), jnp.float32)
    w_x_pad = w_x_pad.at[:, :D_out].set(params["w_fc_x"].T.astype(jnp.float32))
    w_n_pad = jnp.zeros((H, out_pad), jnp.float32)
    w_n_pad = w_n_pad.at[:, D_out:2 * D_out].set(
        params["w_fc_neib"].T.astype(jnp.float32))

    return {"w_ih": w_ih_t, "w_hh": w_hh_t, "b": b,
            "w_x": w_x_pad, "w_n": w_n_pad}


@functools.partial(jax.jit, static_argnames=("output_dim",))
def lstm_aggregator(x, neibs, prep, *, output_dim):
    """x: (N, D_in) f32; neibs: (N*T, D_in) f32. Returns (N, 2*output_dim)."""
    N, D_in = x.shape
    T = neibs.shape[0] // N
    agg = neibs.reshape(N, T, D_in)                       # row-major view, no transpose

    # Row-block size: multiple of 8 (sublane) up to 128; the per-block working
    # set (double-buffered (BN,T,D_in) input + weights + (BN,128) out) stays
    # far under the 32 MiB scoped-VMEM default on every generation (incl. v7x).
    BN = min(128, _round_up(N, 8))
    N_pad = _round_up(N, BN)
    if N_pad != N:
        x = jnp.pad(x, ((0, N_pad - N), (0, 0)))
        agg = jnp.pad(agg, ((0, N_pad - N), (0, 0), (0, 0)))

    w_ih, w_hh, b = prep["w_ih"], prep["w_hh"], prep["b"]
    w_x, w_n = prep["w_x"], prep["w_n"]
    out_pad = w_x.shape[1]

    out = pl.pallas_call(
        _lstm_agg_kernel,
        out_shape=jax.ShapeDtypeStruct((N_pad, out_pad), jnp.float32),
        grid=(N_pad // BN,),
        in_specs=[
            pl.BlockSpec((BN, T, D_in), lambda i: (i, 0, 0)),   # neighbor block
            pl.BlockSpec((BN, D_in), lambda i: (i, 0)),         # x block
            pl.BlockSpec(w_ih.shape, lambda i: (0, 0)),         # weights: same
            pl.BlockSpec(w_hh.shape, lambda i: (0, 0)),         #   block every
            pl.BlockSpec(b.shape, lambda i: (0, 0)),            #   grid step
            pl.BlockSpec(w_x.shape, lambda i: (0, 0)),
            pl.BlockSpec(w_n.shape, lambda i: (0, 0)),
        ],
        out_specs=pl.BlockSpec((BN, out_pad), lambda i: (i, 0)),
        compiler_params=pltpu.CompilerParams(
            dimension_semantics=("parallel",)),                 # 2 TCs on v7x
    )(agg, x, w_ih, w_hh, b, w_x, w_n)

    return out[:N, :2 * output_dim]


def _reference(x, neibs, params, hidden_dim, output_dim):
    """Pure-JAX reference implementing the same PyTorch forward."""
    N, D_in = x.shape
    T = neibs.shape[0] // N
    seq = neibs.reshape(N, T, D_in)
    H = hidden_dim

    def step(carry, x_t):
        h, c = carry
        gates = x_t @ params["w_ih"].T + h @ params["w_hh"].T \
            + params["b_ih"] + params["b_hh"]
        i_g = jax.nn.sigmoid(gates[:, 0 * H:1 * H])
        f_g = jax.nn.sigmoid(gates[:, 1 * H:2 * H])
        g_g = jnp.tanh(gates[:, 2 * H:3 * H])
        o_g = jax.nn.sigmoid(gates[:, 3 * H:4 * H])
        c = f_g * c + i_g * g_g
        h = o_g * jnp.tanh(c)
        return (h, c), None

    h0 = jnp.zeros((N, H), jnp.float32)
    (h_last, _), _ = lax.scan(step, (h0, h0), seq.transpose(1, 0, 2))
    x_emb = x @ params["w_fc_x"].T
    neib_emb = h_last @ params["w_fc_neib"].T
    out = jnp.concatenate([x_emb, neib_emb], axis=1)
    return jnp.maximum(out, 0.0)


if __name__ == "__main__":
    # Small shapes consistent with the module.
    N = 2            # batch (number of nodes)
    T = 8            # neighbors per node (LSTM sequence length)
    D_in = 16        # input_dim
    H = 32           # hidden_dim
    D_out = 8        # output_dim

    key = jax.random.PRNGKey(0)
    ks = jax.random.split(key, 8)
    scale = 0.1
    params = {
        "w_ih": scale * jax.random.normal(ks[0], (4 * H, D_in), jnp.float32),
        "w_hh": scale * jax.random.normal(ks[1], (4 * H, H), jnp.float32),
        "b_ih": scale * jax.random.normal(ks[2], (4 * H,), jnp.float32),
        "b_hh": scale * jax.random.normal(ks[3], (4 * H,), jnp.float32),
        "w_fc_x": scale * jax.random.normal(ks[4], (D_out, D_in), jnp.float32),
        "w_fc_neib": scale * jax.random.normal(ks[5], (D_out, H), jnp.float32),
    }
    x = jax.random.normal(ks[6], (N, D_in), jnp.float32)
    neibs = jax.random.normal(ks[7], (N * T, D_in), jnp.float32)

    prep = prepare_lstm_agg_params(params)       # one-time weight re-layout
    out = lstm_aggregator(x, neibs, prep, output_dim=D_out)
    out = jax.block_until_ready(out)

    ref = _reference(x, neibs, params, H, D_out)
    assert out.shape == (N, 2 * D_out)
    assert jnp.allclose(out, ref, atol=1e-4, rtol=1e-4), "mismatch vs reference"

    print("KERNEL_OK")
</pallas_src>

<mosaic_0001>
module attributes {stable_mosaic.version = 11 : i64} {
  func.func @_lstm_agg_kernel(%arg0: i32, %arg1: memref<8x8x16xf32, #tpu.memory_space<vmem>>, %arg2: memref<8x16xf32, #tpu.memory_space<vmem>>, %arg3: memref<16x128xf32, #tpu.memory_space<vmem>>, %arg4: memref<32x128xf32, #tpu.memory_space<vmem>>, %arg5: memref<1x128xf32, #tpu.memory_space<vmem>>, %arg6: memref<16x128xf32, #tpu.memory_space<vmem>>, %arg7: memref<32x128xf32, #tpu.memory_space<vmem>>, %arg8: memref<8x128xf32, #tpu.memory_space<vmem>>) attributes {dimension_semantics = [#tpu.dimension_semantics<parallel>], iteration_bounds = array<i64: 1>, scalar_prefetch = 0 : i64, scratch_operands = 0 : i64, tpu.core_type = #tpu.core_type<tc>, window_params = [{transform_indices = @transform_0, window_bounds = array<i64: 8, 8, 16>}, {transform_indices = @transform_1, window_bounds = array<i64: 8, 16>}, {pipeline_mode = #tpu.pipeline_mode<synchronous>, transform_indices = @transform_2, window_bounds = array<i64: 16, 128>}, {pipeline_mode = #tpu.pipeline_mode<synchronous>, transform_indices = @transform_3, window_bounds = array<i64: 32, 128>}, {pipeline_mode = #tpu.pipeline_mode<synchronous>, transform_indices = @transform_4, window_bounds = array<i64: 1, 128>}, {pipeline_mode = #tpu.pipeline_mode<synchronous>, transform_indices = @transform_5, window_bounds = array<i64: 16, 128>}, {pipeline_mode = #tpu.pipeline_mode<synchronous>, transform_indices = @transform_6, window_bounds = array<i64: 32, 128>}, {transform_indices = @transform_7, window_bounds = array<i64: 8, 128>}]} {
    %c0 = arith.constant 0 : index
    %c0_0 = arith.constant 0 : index
    %c0_1 = arith.constant 0 : index
    %0 = vector.load %arg1[%c0, %c0_0, %c0_1] : memref<8x8x16xf32, #tpu.memory_space<vmem>>, vector<8x8x16xf32>
    %1 = vector.shape_cast %0 : vector<8x8x16xf32> to vector<64x16xf32>
    %c0_2 = arith.constant 0 : index
    %c0_3 = arith.constant 0 : index
    %2 = vector.load %arg3[%c0_2, %c0_3] : memref<16x128xf32, #tpu.memory_space<vmem>>, vector<16x128xf32>
    %cst = arith.constant dense<0.000000e+00> : vector<64x128xf32>
    %3 = tpu.matmul %1, %2, %cst {dimension_numbers = #tpu.dot_dimension_numbers<[1], [0], [0], [1], [0, 0, 1, 1], [], []>} : vector<64x16xf32>, vector<16x128xf32>, vector<64x128xf32> -> vector<64x128xf32>
    %c0_4 = arith.constant 0 : index
    %c0_5 = arith.constant 0 : index
    %4 = vector.load %arg5[%c0_4, %c0_5] : memref<1x128xf32, #tpu.memory_space<vmem>>, vector<1x128xf32>
    %5 = vector.broadcast %4 : vector<1x128xf32> to vector<64x128xf32>
    %6 = arith.addf %3, %5 : vector<64x128xf32>
    %7 = vector.shape_cast %6 : vector<64x128xf32> to vector<8x8x128xf32>
    %c0_6 = arith.constant 0 : index
    %c0_7 = arith.constant 0 : index
    %8 = vector.load %arg4[%c0_6, %c0_7] : memref<32x128xf32, #tpu.memory_space<vmem>>, vector<32x128xf32>
    %cst_8 = arith.constant 0.000000e+00 : f32
    %9 = vector.broadcast %cst_8 : f32 to vector<8x32xf32>
    %cst_9 = arith.constant 0.000000e+00 : f32
    %10 = vector.broadcast %cst_9 : f32 to vector<8x32xf32>
    %11 = vector.extract_strided_slice %7 {offsets = [0, 0, 0], sizes = [8, 1, 128], strides = [1, 1, 1]} : vector<8x8x128xf32> to vector<8x1x128xf32>
    %12 = vector.shape_cast %11 : vector<8x1x128xf32> to vector<8x128xf32>
    %cst_10 = arith.constant dense<0.000000e+00> : vector<8x128xf32>
    %13 = tpu.matmul %9, %8, %cst_10 {dimension_numbers = #tpu.dot_dimension_numbers<[1], [0], [0], [1], [0, 0, 1, 1], [], []>} : vector<8x32xf32>, vector<32x128xf32>, vector<8x128xf32> -> vector<8x128xf32>
    %14 = arith.addf %12, %13 : vector<8x128xf32>
    %15 = vector.extract_strided_slice %14 {offsets = [0, 0], sizes = [8, 96], strides = [1, 1]} : vector<8x128xf32> to vector<8x96xf32>
    %16 = arith.negf %15 : vector<8x96xf32>
    %17 = math.exp %16 : vector<8x96xf32>
    %cst_11 = arith.constant 1.000000e+00 : f32
    %18 = vector.broadcast %cst_11 : f32 to vector<8x96xf32>
    %19 = arith.addf %18, %17 : vector<8x96xf32>
    %20 = arith.divf %18, %19 : vector<8x96xf32>
    %21 = vector.extract_strided_slice %14 {offsets = [0, 96], sizes = [8, 32], strides = [1, 1]} : vector<8x128xf32> to vector<8x32xf32>
    %22 = math.tanh %21 : vector<8x32xf32>
    %23 = vector.extract_strided_slice %20 {offsets = [0, 0], sizes = [8, 32], strides = [1, 1]} : vector<8x96xf32> to vector<8x32xf32>
    %24 = vector.extract_strided_slice %20 {offsets = [0, 32], sizes = [8, 32], strides = [1, 1]} : vector<8x96xf32> to vector<8x32xf32>
    %25 = vector.extract_strided_slice %20 {offsets = [0, 64], sizes = [8, 32], strides = [1, 1]} : vector<8x96xf32> to vector<8x32xf32>
    %26 = arith.mulf %24, %10 : vector<8x32xf32>
    %27 = arith.mulf %23, %22 : vector<8x32xf32>
    %28 = arith.addf %26, %27 : vector<8x32xf32>
    %29 = math.tanh %28 : vector<8x32xf32>
    %30 = arith.mulf %25, %29 : vector<8x32xf32>
    %31 = vector.extract_strided_slice %7 {offsets = [0, 1, 0], sizes = [8, 1, 128], strides = [1, 1, 1]} : vector<8x8x128xf32> to vector<8x1x128xf32>
    %32 = vector.shape_cast %31 : vector<8x1x128xf32> to vector<8x128xf32>
    %cst_12 = arith.constant dense<0.000000e+00> : vector<8x128xf32>
    %33 = tpu.matmul %30, %8, %cst_12 {dimension_numbers = #tpu.dot_dimension_numbers<[1], [0], [0], [1], [0, 0, 1, 1], [], []>} : vector<8x32xf32>, vector<32x128xf32>, vector<8x128xf32> -> vector<8x128xf32>
    %34 = arith.addf %32, %33 : vector<8x128xf32>
    %35 = vector.extract_strided_slice %34 {offsets = [0, 0], sizes = [8, 96], strides = [1, 1]} : vector<8x128xf32> to vector<8x96xf32>
    %36 = arith.negf %35 : vector<8x96xf32>
    %37 = math.exp %36 : vector<8x96xf32>
    %cst_13 = arith.constant 1.000000e+00 : f32
    %38 = vector.broadcast %cst_13 : f32 to vector<8x96xf32>
    %39 = arith.addf %38, %37 : vector<8x96xf32>
    %40 = arith.divf %38, %39 : vector<8x96xf32>
    %41 = vector.extract_strided_slice %34 {offsets = [0, 96], sizes = [8, 32], strides = [1, 1]} : vector<8x128xf32> to vector<8x32xf32>
    %42 = math.tanh %41 : vector<8x32xf32>
    %43 = vector.extract_strided_slice %40 {offsets = [0, 0], sizes = [8, 32], strides = [1, 1]} : vector<8x96xf32> to vector<8x32xf32>
    %44 = vector.extract_strided_slice %40 {offsets = [0, 32], sizes = [8, 32], strides = [1, 1]} : vector<8x96xf32> to vector<8x32xf32>
    %45 = vector.extract_strided_slice %40 {offsets = [0, 64], sizes = [8, 32], strides = [1, 1]} : vector<8x96xf32> to vector<8x32xf32>
    %46 = arith.mulf %44, %28 : vector<8x32xf32>
    %47 = arith.mulf %43, %42 : vector<8x32xf32>
    %48 = arith.addf %46, %47 : vector<8x32xf32>
    %49 = math.tanh %48 : vector<8x32xf32>
    %50 = arith.mulf %45, %49 : vector<8x32xf32>
    %51 = vector.extract_strided_slice %7 {offsets = [0, 2, 0], sizes = [8, 1, 128], strides = [1, 1, 1]} : vector<8x8x128xf32> to vector<8x1x128xf32>
    %52 = vector.shape_cast %51 : vector<8x1x128xf32> to vector<8x128xf32>
    %cst_14 = arith.constant dense<0.000000e+00> : vector<8x128xf32>
    %53 = tpu.matmul %50, %8, %cst_14 {dimension_numbers = #tpu.dot_dimension_numbers<[1], [0], [0], [1], [0, 0, 1, 1], [], []>} : vector<8x32xf32>, vector<32x128xf32>, vector<8x128xf32> -> vector<8x128xf32>
    %54 = arith.addf %52, %53 : vector<8x128xf32>
    %55 = vector.extract_strided_slice %54 {offsets = [0, 0], sizes = [8, 96], strides = [1, 1]} : vector<8x128xf32> to vector<8x96xf32>
    %56 = arith.negf %55 : vector<8x96xf32>
    %57 = math.exp %56 : vector<8x96xf32>
    %cst_15 = arith.constant 1.000000e+00 : f32
    %58 = vector.broadcast %cst_15 : f32 to vector<8x96xf32>
    %59 = arith.addf %58, %57 : vector<8x96xf32>
    %60 = arith.divf %58, %59 : vector<8x96xf32>
    %61 = vector.extract_strided_slice %54 {offsets = [0, 96], sizes = [8, 32], strides = [1, 1]} : vector<8x128xf32> to vector<8x32xf32>
    %62 = math.tanh %61 : vector<8x32xf32>
    %63 = vector.extract_strided_slice %60 {offsets = [0, 0], sizes = [8, 32], strides = [1, 1]} : vector<8x96xf32> to vector<8x32xf32>
    %64 = vector.extract_strided_slice %60 {offsets = [0, 32], sizes = [8, 32], strides = [1, 1]} : vector<8x96xf32> to vector<8x32xf32>
    %65 = vector.extract_strided_slice %60 {offsets = [0, 64], sizes = [8, 32], strides = [1, 1]} : vector<8x96xf32> to vector<8x32xf32>
    %66 = arith.mulf %64, %48 : vector<8x32xf32>
    %67 = arith.mulf %63, %62 : vector<8x32xf32>
    %68 = arith.addf %66, %67 : vector<8x32xf32>
    %69 = math.tanh %68 : vector<8x32xf32>
    %70 = arith.mulf %65, %69 : vector<8x32xf32>
    %71 = vector.extract_strided_slice %7 {offsets = [0, 3, 0], sizes = [8, 1, 128], strides = [1, 1, 1]} : vector<8x8x128xf32> to vector<8x1x128xf32>
    %72 = vector.shape_cast %71 : vector<8x1x128xf32> to vector<8x128xf32>
    %cst_16 = arith.constant dense<0.000000e+00> : vector<8x128xf32>
    %73 = tpu.matmul %70, %8, %cst_16 {dimension_numbers = #tpu.dot_dimension_numbers<[1], [0], [0], [1], [0, 0, 1, 1], [], []>} : vector<8x32xf32>, vector<32x128xf32>, vector<8x128xf32> -> vector<8x128xf32>
    %74 = arith.addf %72, %73 : vector<8x128xf32>
    %75 = vector.extract_strided_slice %74 {offsets = [0, 0], sizes = [8, 96], strides = [1, 1]} : vector<8x128xf32> to vector<8x96xf32>
    %76 = arith.negf %75 : vector<8x96xf32>
    %77 = math.exp %76 : vector<8x96xf32>
    %cst_17 = arith.constant 1.000000e+00 : f32
    %78 = vector.broadcast %cst_17 : f32 to vector<8x96xf32>
    %79 = arith.addf %78, %77 : vector<8x96xf32>
    %80 = arith.divf %78, %79 : vector<8x96xf32>
    %81 = vector.extract_strided_slice %74 {offsets = [0, 96], sizes = [8, 32], strides = [1, 1]} : vector<8x128xf32> to vector<8x32xf32>
    %82 = math.tanh %81 : vector<8x32xf32>
    %83 = vector.extract_strided_slice %80 {offsets = [0, 0], sizes = [8, 32], strides = [1, 1]} : vector<8x96xf32> to vector<8x32xf32>
    %84 = vector.extract_strided_slice %80 {offsets = [0, 32], sizes = [8, 32], strides = [1, 1]} : vector<8x96xf32> to vector<8x32xf32>
    %85 = vector.extract_strided_slice %80 {offsets = [0, 64], sizes = [8, 32], strides = [1, 1]} : vector<8x96xf32> to vector<8x32xf32>
    %86 = arith.mulf %84, %68 : vector<8x32xf32>
    %87 = arith.mulf %83, %82 : vector<8x32xf32>
    %88 = arith.addf %86, %87 : vector<8x32xf32>
    %89 = math.tanh %88 : vector<8x32xf32>
    %90 = arith.mulf %85, %89 : vector<8x32xf32>
    %91 = vector.extract_strided_slice %7 {offsets = [0, 4, 0], sizes = [8, 1, 128], strides = [1, 1, 1]} : vector<8x8x128xf32> to vector<8x1x128xf32>
    %92 = vector.shape_cast %91 : vector<8x1x128xf32> to vector<8x128xf32>
    %cst_18 = arith.constant dense<0.000000e+00> : vector<8x128xf32>
    %93 = tpu.matmul %90, %8, %cst_18 {dimension_numbers = #tpu.dot_dimension_numbers<[1], [0], [0], [1], [0, 0, 1, 1], [], []>} : vector<8x32xf32>, vector<32x128xf32>, vector<8x128xf32> -> vector<8x128xf32>
    %94 = arith.addf %92, %93 : vector<8x128xf32>
    %95 = vector.extract_strided_slice %94 {offsets = [0, 0], sizes = [8, 96], strides = [1, 1]} : vector<8x128xf32> to vector<8x96xf32>
    %96 = arith.negf %95 : vector<8x96xf32>
    %97 = math.exp %96 : vector<8x96xf32>
    %cst_19 = arith.constant 1.000000e+00 : f32
    %98 = vector.broadcast %cst_19 : f32 to vector<8x96xf32>
    %99 = arith.addf %98, %97 : vector<8x96xf32>
    %100 = arith.divf %98, %99 : vector<8x96xf32>
    %101 = vector.extract_strided_slice %94 {offsets = [0, 96], sizes = [8, 32], strides = [1, 1]} : vector<8x128xf32> to vector<8x32xf32>
    %102 = math.tanh %101 : vector<8x32xf32>
    %103 = vector.extract_strided_slice %100 {offsets = [0, 0], sizes = [8, 32], strides = [1, 1]} : vector<8x96xf32> to vector<8x32xf32>
    %104 = vector.extract_strided_slice %100 {offsets = [0, 32], sizes = [8, 32], strides = [1, 1]} : vector<8x96xf32> to vector<8x32xf32>
    %105 = vector.extract_strided_slice %100 {offsets = [0, 64], sizes = [8, 32], strides = [1, 1]} : vector<8x96xf32> to vector<8x32xf32>
    %106 = arith.mulf %104, %88 : vector<8x32xf32>
    %107 = arith.mulf %103, %102 : vector<8x32xf32>
    %108 = arith.addf %106, %107 : vector<8x32xf32>
    %109 = math.tanh %108 : vector<8x32xf32>
    %110 = arith.mulf %105, %109 : vector<8x32xf32>
    %111 = vector.extract_strided_slice %7 {offsets = [0, 5, 0], sizes = [8, 1, 128], strides = [1, 1, 1]} : vector<8x8x128xf32> to vector<8x1x128xf32>
    %112 = vector.shape_cast %111 : vector<8x1x128xf32> to vector<8x128xf32>
    %cst_20 = arith.constant dense<0.000000e+00> : vector<8x128xf32>
    %113 = tpu.matmul %110, %8, %cst_20 {dimension_numbers = #tpu.dot_dimension_numbers<[1], [0], [0], [1], [0, 0, 1, 1], [], []>} : vector<8x32xf32>, vector<32x128xf32>, vector<8x128xf32> -> vector<8x128xf32>
    %114 = arith.addf %112, %113 : vector<8x128xf32>
    %115 = vector.extract_strided_slice %114 {offsets = [0, 0], sizes = [8, 96], strides = [1, 1]} : vector<8x128xf32> to vector<8x96xf32>
    %116 = arith.negf %115 : vector<8x96xf32>
    %117 = math.exp %116 : vector<8x96xf32>
    %cst_21 = arith.constant 1.000000e+00 : f32
    %118 = vector.broadcast %cst_21 : f32 to vector<8x96xf32>
    %119 = arith.addf %118, %117 : vector<8x96xf32>
    %120 = arith.divf %118, %119 : vector<8x96xf32>
    %121 = vector.extract_strided_slice %114 {offsets = [0, 96], sizes = [8, 32], strides = [1, 1]} : vector<8x128xf32> to vector<8x32xf32>
    %122 = math.tanh %121 : vector<8x32xf32>
    %123 = vector.extract_strided_slice %120 {offsets = [0, 0], sizes = [8, 32], strides = [1, 1]} : vector<8x96xf32> to vector<8x32xf32>
    %124 = vector.extract_strided_slice %120 {offsets = [0, 32], sizes = [8, 32], strides = [1, 1]} : vector<8x96xf32> to vector<8x32xf32>
    %125 = vector.extract_strided_slice %120 {offsets = [0, 64], sizes = [8, 32], strides = [1, 1]} : vector<8x96xf32> to vector<8x32xf32>
    %126 = arith.mulf %124, %108 : vector<8x32xf32>
    %127 = arith.mulf %123, %122 : vector<8x32xf32>
    %128 = arith.addf %126, %127 : vector<8x32xf32>
    %129 = math.tanh %128 : vector<8x32xf32>
    %130 = arith.mulf %125, %129 : vector<8x32xf32>
    %131 = vector.extract_strided_slice %7 {offsets = [0, 6, 0], sizes = [8, 1, 128], strides = [1, 1, 1]} : vector<8x8x128xf32> to vector<8x1x128xf32>
    %132 = vector.shape_cast %131 : vector<8x1x128xf32> to vector<8x128xf32>
    %cst_22 = arith.constant dense<0.000000e+00> : vector<8x128xf32>
    %133 = tpu.matmul %130, %8, %cst_22 {dimension_numbers = #tpu.dot_dimension_numbers<[1], [0], [0], [1], [0, 0, 1, 1], [], []>} : vector<8x32xf32>, vector<32x128xf32>, vector<8x128xf32> -> vector<8x128xf32>
    %134 = arith.addf %132, %133 : vector<8x128xf32>
    %135 = vector.extract_strided_slice %134 {offsets = [0, 0], sizes = [8, 96], strides = [1, 1]} : vector<8x128xf32> to vector<8x96xf32>
    %136 = arith.negf %135 : vector<8x96xf32>
    %137 = math.exp %136 : vector<8x96xf32>
    %cst_23 = arith.constant 1.000000e+00 : f32
    %138 = vector.broadcast %cst_23 : f32 to vector<8x96xf32>
    %139 = arith.addf %138, %137 : vector<8x96xf32>
    %140 = arith.divf %138, %139 : vector<8x96xf32>
    %141 = vector.extract_strided_slice %134 {offsets = [0, 96], sizes = [8, 32], strides = [1, 1]} : vector<8x128xf32> to vector<8x32xf32>
    %142 = math.tanh %141 : vector<8x32xf32>
    %143 = vector.extract_strided_slice %140 {offsets = [0, 0], sizes = [8, 32], strides = [1, 1]} : vector<8x96xf32> to vector<8x32xf32>
    %144 = vector.extract_strided_slice %140 {offsets = [0, 32], sizes = [8, 32], strides = [1, 1]} : vector<8x96xf32> to vector<8x32xf32>
    %145 = vector.extract_strided_slice %140 {offsets = [0, 64], sizes = [8, 32], strides = [1, 1]} : vector<8x96xf32> to vector<8x32xf32>
    %146 = arith.mulf %144, %128 : vector<8x32xf32>
    %147 = arith.mulf %143, %142 : vector<8x32xf32>
    %148 = arith.addf %146, %147 : vector<8x32xf32>
    %149 = math.tanh %148 : vector<8x32xf32>
    %150 = arith.mulf %145, %149 : vector<8x32xf32>
    %151 = vector.extract_strided_slice %7 {offsets = [0, 7, 0], sizes = [8, 1, 128], strides = [1, 1, 1]} : vector<8x8x128xf32> to vector<8x1x128xf32>
    %152 = vector.shape_cast %151 : vector<8x1x128xf32> to vector<8x128xf32>
    %cst_24 = arith.constant dense<0.000000e+00> : vector<8x128xf32>
    %153 = tpu.matmul %150, %8, %cst_24 {dimension_numbers = #tpu.dot_dimension_numbers<[1], [0], [0], [1], [0, 0, 1, 1], [], []>} : vector<8x32xf32>, vector<32x128xf32>, vector<8x128xf32> -> vector<8x128xf32>
    %154 = arith.addf %152, %153 : vector<8x128xf32>
    %155 = vector.extract_strided_slice %154 {offsets = [0, 0], sizes = [8, 96], strides = [1, 1]} : vector<8x128xf32> to vector<8x96xf32>
    %156 = arith.negf %155 : vector<8x96xf32>
    %157 = math.exp %156 : vector<8x96xf32>
    %cst_25 = arith.constant 1.000000e+00 : f32
    %158 = vector.broadcast %cst_25 : f32 to vector<8x96xf32>
    %159 = arith.addf %158, %157 : vector<8x96xf32>
    %160 = arith.divf %158, %159 : vector<8x96xf32>
    %161 = vector.extract_strided_slice %154 {offsets = [0, 96], sizes = [8, 32], strides = [1, 1]} : vector<8x128xf32> to vector<8x32xf32>
    %162 = math.tanh %161 : vector<8x32xf32>
    %163 = vector.extract_strided_slice %160 {offsets = [0, 0], sizes = [8, 32], strides = [1, 1]} : vector<8x96xf32> to vector<8x32xf32>
    %164 = vector.extract_strided_slice %160 {offsets = [0, 32], sizes = [8, 32], strides = [1, 1]} : vector<8x96xf32> to vector<8x32xf32>
    %165 = vector.extract_strided_slice %160 {offsets = [0, 64], sizes = [8, 32], strides = [1, 1]} : vector<8x96xf32> to vector<8x32xf32>
    %166 = arith.mulf %164, %148 : vector<8x32xf32>
    %167 = arith.mulf %163, %162 : vector<8x32xf32>
    %168 = arith.addf %166, %167 : vector<8x32xf32>
    %169 = math.tanh %168 : vector<8x32xf32>
    %170 = arith.mulf %165, %169 : vector<8x32xf32>
    %c0_26 = arith.constant 0 : index
    %c0_27 = arith.constant 0 : index
    %171 = vector.load %arg2[%c0_26, %c0_27] : memref<8x16xf32, #tpu.memory_space<vmem>>, vector<8x16xf32>
    %c0_28 = arith.constant 0 : index
    %c0_29 = arith.constant 0 : index
    %172 = vector.load %arg6[%c0_28, %c0_29] : memref<16x128xf32, #tpu.memory_space<vmem>>, vector<16x128xf32>
    %cst_30 = arith.constant dense<0.000000e+00> : vector<8x128xf32>
    %173 = tpu.matmul %171, %172, %cst_30 {dimension_numbers = #tpu.dot_dimension_numbers<[1], [0], [0], [1], [0, 0, 1, 1], [], []>} : vector<8x16xf32>, vector<16x128xf32>, vector<8x128xf32> -> vector<8x128xf32>
    %c0_31 = arith.constant 0 : index
    %c0_32 = arith.constant 0 : index
    %174 = vector.load %arg7[%c0_31, %c0_32] : memref<32x128xf32, #tpu.memory_space<vmem>>, vector<32x128xf32>
    %cst_33 = arith.constant dense<0.000000e+00> : vector<8x128xf32>
    %175 = tpu.matmul %170, %174, %cst_33 {dimension_numbers = #tpu.dot_dimension_numbers<[1], [0], [0], [1], [0, 0, 1, 1], [], []>} : vector<8x32xf32>, vector<32x128xf32>, vector<8x128xf32> -> vector<8x128xf32>
    %176 = arith.addf %173, %175 : vector<8x128xf32>
    %cst_34 = arith.constant 0.000000e+00 : f32
    %177 = vector.broadcast %cst_34 : f32 to vector<8x128xf32>
    %178 = arith.maximumf %176, %177 : vector<8x128xf32>
    %c0_35 = arith.constant 0 : index
    %c0_36 = arith.constant 0 : index
    %179 = vector.load %arg8[%c0_35, %c0_36] : memref<8x128xf32, #tpu.memory_space<vmem>>, vector<8x128xf32>
    tpu.vector_store %arg8[%c0_35, %c0_36], %178 {strides = array<i32>} : memref<8x128xf32, #tpu.memory_space<vmem>>, vector<8x128xf32>,
    return
  }
  func.func @transform_0(%arg0: i32) -> (i32, i32, i32) {
    %c0_i32 = arith.constant 0 : i32
    %c0_i32_0 = arith.constant 0 : i32
    %c0_i32_1 = arith.constant 0 : i32
    return %arg0, %c0_i32, %c0_i32_0 : i32, i32, i32
  }
  func.func @transform_1(%arg0: i32) -> (i32, i32) {
    %c0_i32 = arith.constant 0 : i32
    %c0_i32_0 = arith.constant 0 : i32
    return %arg0, %c0_i32 : i32, i32
  }
  func.func @transform_2(%arg0: i32) -> (i32, i32) {
    %c0_i32 = arith.constant 0 : i32
    %c0_i32_0 = arith.constant 0 : i32
    %c0_i32_1 = arith.constant 0 : i32
    return %c0_i32, %c0_i32_0 : i32, i32
  }
  func.func @transform_3(%arg0: i32) -> (i32, i32) {
    %c0_i32 = arith.constant 0 : i32
    %c0_i32_0 = arith.constant 0 : i32
    %c0_i32_1 = arith.constant 0 : i32
    return %c0_i32, %c0_i32_0 : i32, i32
  }
  func.func @transform_4(%arg0: i32) -> (i32, i32) {
    %c0_i32 = arith.constant 0 : i32
    %c0_i32_0 = arith.constant 0 : i32
    %c0_i32_1 = arith.constant 0 : i32
    return %c0_i32, %c0_i32_0 : i32, i32
  }
  func.func @transform_5(%arg0: i32) -> (i32, i32) {
    %c0_i32 = arith.constant 0 : i32
    %c0_i32_0 = arith.constant 0 : i32
    %c0_i32_1 = arith.constant 0 : i32
    return %c0_i32, %c0_i32_0 : i32, i32
  }
  func.func @transform_6(%arg0: i32) -> (i32, i32) {
    %c0_i32 = arith.constant 0 : i32
    %c0_i32_0 = arith.constant 0 : i32
    %c0_i32_1 = arith.constant 0 : i32
    return %c0_i32, %c0_i32_0 : i32, i32
  }
  func.func @transform_7(%arg0: i32) -> (i32, i32) {
    %c0_i32 = arith.constant 0 : i32
    %c0_i32_0 = arith.constant 0 : i32
    return %arg0, %c0_i32 : i32, i32
  }
}

</mosaic_0001>

<llo_original>
// kernel: lstm_aggregator.1
$region0: #{lstm_aggregator.1}
  #allocation0 [shape = 'u32[]', space=smem, size = 0x4, offset = 0x4, fixed_abs, tag = 'smem constant byte address 0x4 - core index']
  #allocation1 [shape = 'u32[72,128]{1,0:T(1,128)}', space=vmem, size = 0x9000, scoped, tag = 'internal scratch']
  %s0 = inlined_call_operand.vmem [shape: f32[8,8,16], index: 0, kind: input, shape index: {}]
  %s1 = inlined_call_operand.vmem [shape: f32[8,16], index: 1, kind: input, shape index: {}]
  %s2 = inlined_call_operand.vmem [shape: f32[16,128], index: 2, kind: input, shape index: {}]
  %s3 = inlined_call_operand.vmem [shape: f32[32,128], index: 3, kind: input, shape index: {}]
  %s4 = inlined_call_operand.vmem [shape: f32[1,128], index: 4, kind: input, shape index: {}]
  %s5 = inlined_call_operand.vmem [shape: f32[16,128], index: 5, kind: input, shape index: {}]
  %s6 = inlined_call_operand.vmem [shape: f32[32,128], index: 6, kind: input, shape index: {}]
  %s7 = inlined_call_operand.vmem [shape: f32[8,128], index: 7, kind: output, shape index: {}]
  %s8 = sld [smem:[#allocation0]]
  $region38: #{lstm_aggregator.1} parent=0
    _
  %s10 = ssub.s32 1, %s8
  %s11 = scalar_select 0, %s10, %s8
  // Predicated region
  $region2: #{lstm_aggregator.1} parent=0 // pred_check
    _
  $region3: #{lstm_aggregator.1} parent=0 // pred_check_branch
    %13 = sbr.rel (0) target = $region5
  $region4: #{lstm_aggregator.1} parent=0 // pred_region
    _
  $region5: #{lstm_aggregator.1} parent=0 // pred_fallthru
    _
  // Predicated region
  $region6: #{lstm_aggregator.1} parent=0 // pred_check
    _
  $region7: #{lstm_aggregator.1} parent=0 // pred_check_branch
    %15 = sbr.rel (0) target = $region9
  $region8: #{lstm_aggregator.1} parent=0 // pred_region
    _
  $region9: #{lstm_aggregator.1} parent=0 // pred_fallthru
    _
  // Predicated region
  $region10: #{lstm_aggregator.1} parent=0 // pred_check
    _
  $region11: #{lstm_aggregator.1} parent=0 // pred_check_branch
    %17 = sbr.rel (0) target = $region13
  $region12: #{lstm_aggregator.1} parent=0 // pred_region
    _
  $region13: #{lstm_aggregator.1} parent=0 // pred_fallthru
    _
  // Predicated region
  $region14: #{lstm_aggregator.1} parent=0 // pred_check
    _
  $region15: #{lstm_aggregator.1} parent=0 // pred_check_branch
    %19 = sbr.rel (0) target = $region17
  $region16: #{lstm_aggregator.1} parent=0 // pred_region
    _
  $region17: #{lstm_aggregator.1} parent=0 // pred_fallthru
    _
  // Predicated region
  $region18: #{lstm_aggregator.1} parent=0 // pred_check
    _
  $region19: #{lstm_aggregator.1} parent=0 // pred_check_branch
    %21 = sbr.rel (0) target = $region21
  $region20: #{lstm_aggregator.1} parent=0 // pred_region
    _
  $region21: #{lstm_aggregator.1} parent=0 // pred_fallthru
    _
  // Predicated region
  $region22: #{lstm_aggregator.1} parent=0 // pred_check
    _
  $region23: #{lstm_aggregator.1} parent=0 // pred_check_branch
    %23 = sbr.rel (0) target = $region25
  $region24: #{lstm_aggregator.1} parent=0 // pred_region
    _
  $region25: #{lstm_aggregator.1} parent=0 // pred_fallthru
    _
  // Predicated region
  $region26: #{lstm_aggregator.1} parent=0 // pred_check
    _
  $region27: #{lstm_aggregator.1} parent=0 // pred_check_branch
    %25 = sbr.rel (0) target = $region29
  $region28: #{lstm_aggregator.1} parent=0 // pred_region
    _
  $region29: #{lstm_aggregator.1} parent=0 // pred_fallthru
    _
  %v26 = vld [vmem:[%s0] sm:$0xff]
  %v27 = vld [vmem:[%s0 + $0x8] sm:$0xff]
  %v28 = vld [vmem:[%s0 + $0x10] sm:$0xff]
  %v29 = vld [vmem:[%s0 + $0x18] sm:$0xff]
  %v30 = vld [vmem:[%s0 + $0x20] sm:$0xff]
  %v31 = vld [vmem:[%s0 + $0x28] sm:$0xff]
  %v32 = vld [vmem:[%s0 + $0x30] sm:$0xff]
  %v33 = vld [vmem:[%s0 + $0x38] sm:$0xff]
  %v34 = vld [vmem:[%s2] sm:$0xff]
  %v35 = vld [vmem:[%s2 + $0x8] sm:$0xff]
  %v36 = vld [vmem:[%s4] sm:$0x1]
  %v38 = vperm.slane %v36, 0
  %vm40 = vcmask 130048
  %v42 = vsel %vm40, %v26, 0
  %v45 = vsel %vm40, %v27, 0
  %v48 = vsel %vm40, %v28, 0
  %v51 = vsel %vm40, %v29, 0
  %v54 = vsel %vm40, %v30, 0
  %v57 = vsel %vm40, %v31, 0
  %v60 = vsel %vm40, %v32, 0
  %v63 = vsel %vm40, %v33, 0
  %65 = vmatpush.msra.mxu0 0.0
  %66 = vmatpush.msra.mxu0 0.0
  %67 = vmatpush.msra.mxu0 0.0
  %68 = vmatpush.msra.mxu0 0.0
  %69 = vmatpush.msra.mxu0 0.0
  %70 = vmatpush.msra.mxu0 0.0
  %71 = vmatpush.msra.mxu0 0.0
  %72 = vmatpush.msra.mxu0 0.0
  %73 = vmatpush.msra.mxu0 0.0
  %74 = vmatpush.msra.mxu0 0.0
  %75 = vmatpush.msra.mxu0 0.0
  %76 = vmatpush.msra.mxu0 0.0
  %77 = vmatpush.msra.mxu0 0.0
  %78 = vmatpush.msra.mxu0 0.0
  %79 = vmatpush.msra.mxu0 %v35
  %80 = vmatpush.msra.mxu0 %v34
  %81 = vmatmul.f32.gmra.mxu0 %v42
  %v82 = vpop.f32.mrf.mxu0
  %v83 = vadd.f32 %v38, %v82
  %84 = vmatmul.f32.gmra.mxu0 %v45
  %v85 = vpop.f32.mrf.mxu0
  %v86 = vadd.f32 %v38, %v85
  %87 = vmatmul.f32.gmra.mxu0 %v48
  %v88 = vpop.f32.mrf.mxu0
  %v89 = vadd.f32 %v38, %v88
  %90 = vmatmul.f32.gmra.mxu0 %v51
  %v91 = vpop.f32.mrf.mxu0
  %v92 = vadd.f32 %v38, %v91
  %93 = vmatmul.f32.gmra.mxu0 %v54
  %v94 = vpop.f32.mrf.mxu0
  %v95 = vadd.f32 %v38, %v94
  %96 = vmatmul.f32.gmra.mxu0 %v57
  %v97 = vpop.f32.mrf.mxu0
  %v98 = vadd.f32 %v38, %v97
  %99 = vmatmul.f32.gmra.mxu0 %v60
  %v100 = vpop.f32.mrf.mxu0
  %v101 = vadd.f32 %v38, %v100
  %102 = vmatmul.f32.gmra.mxu0 %v63
  %v103 = vpop.f32.mrf.mxu0
  %v104 = vadd.f32 %v38, %v103
  %105 = vdwg.mxu0
  %v106 = vld [vmem:[%s3] sm:$0xff]
  %v107 = vld [vmem:[%s3 + $0x8] sm:$0xff]
  %v108 = vld [vmem:[%s3 + $0x10] sm:$0xff]
  %v109 = vld [vmem:[%s3 + $0x18] sm:$0xff]
  %vm110 = vcmask 261120
  %v112 = vsel %vm110, 0.0, 0
  %114 = vmatpush.msra.mxu0 0.0
  %115 = vmatpush.msra.mxu0 0.0
  %116 = vmatpush.msra.mxu0 0.0
  %117 = vmatpush.msra.mxu0 0.0
  %118 = vmatpush.msra.mxu0 0.0
  %119 = vmatpush.msra.mxu0 0.0
  %120 = vmatpush.msra.mxu0 0.0
  %121 = vmatpush.msra.mxu0 0.0
  %122 = vmatpush.msra.mxu0 0.0
  %123 = vmatpush.msra.mxu0 0.0
  %124 = vmatpush.msra.mxu0 0.0
  %125 = vmatpush.msra.mxu0 0.0
  %126 = vmatpush.msra.mxu0 %v109
  %127 = vmatpush.msra.mxu0 %v108
  %128 = vmatpush.msra.mxu0 %v107
  %129 = vmatpush.msra.mxu0 %v106
  %130 = vmatmul.f32.gmra.mxu0 %v112
  %v131 = vpop.f32.mrf.mxu0
  %v132 = vadd.f32 0.0, %v131
  %133 = vdwg.mxu0
  %v135 = vrot.slane %v132, 1
  %v136 = vrot.slane %v132, 2
  %v137 = vrot.slane %v132, 3
  %v138 = vrot.slane %v132, 4
  %v139 = vrot.slane %v132, 5
  %v140 = vrot.slane %v132, 6
  %v141 = vrot.slane %v132, 7
  %v150 = vadd.f32 %v83, %v132
  %v151 = vadd.f32 %v86, %v135
  %v152 = vadd.f32 %v89, %v136
  %v153 = vadd.f32 %v92, %v137
  %v154 = vadd.f32 %v95, %v138
  %v155 = vadd.f32 %v98, %v139
  %v156 = vadd.f32 %v101, %v140
  %v157 = vadd.f32 %v104, %v141
  %v158 = vxor.u32 %v150, 2147483648
  %v159 = vxor.u32 %v151, 2147483648
  %v160 = vxor.u32 %v152, 2147483648
  %v161 = vxor.u32 %v153, 2147483648
  %v162 = vxor.u32 %v154, 2147483648
  %v163 = vxor.u32 %v155, 2147483648
  %v164 = vxor.u32 %v156, 2147483648
  %v165 = vxor.u32 %v157, 2147483648
  %v166 = vmul.f32 %v158, 1.442695
  %v167 = vpow.pop %v166
  %v168 = vmul.f32 %v159, 1.442695
  %v169 = vpow.pop %v168
  %v170 = vmul.f32 %v160, 1.442695
  %v171 = vpow.pop %v170
  %v172 = vmul.f32 %v161, 1.442695
  %v173 = vpow.pop %v172
  %v174 = vmul.f32 %v162, 1.442695
  %v175 = vpow.pop %v174
  %v176 = vmul.f32 %v163, 1.442695
  %v177 = vpow.pop %v176
  %v178 = vmul.f32 %v164, 1.442695
  %v179 = vpow.pop %v178
  %v180 = vmul.f32 %v165, 1.442695
  %v181 = vpow.pop %v180
  %v182 = vadd.f32 %v167, 1.0
  %v183 = vadd.f32 %v169, 1.0
  %v184 = vadd.f32 %v171, 1.0
  %v185 = vadd.f32 %v173, 1.0
  %v186 = vadd.f32 %v175, 1.0
  %v187 = vadd.f32 %v177, 1.0
  %v188 = vadd.f32 %v179, 1.0
  %v189 = vadd.f32 %v181, 1.0
  %v190 = vrcp.pop %v182
  %v191 = vmul.f32 %v182, %v190
  %v192 = vsub.f32 1.0, %v191
  %v193 = vmul.f32 %v190, %v192
  %v194 = vadd.f32 %v190, %v193
  %vm195 = vweird.f32 %v182
  %vm196 = vweird.f32 %v190
  %vm197 = vmor %vm195, %vm196
  %v198 = vsel %vm197, %v190, %v194
  %v199 = vand.u32 2147483647, %v182
  %vm200 = vcmp.eq.f32.partialorder %v199, 8.507059e+37
  %v201 = vand.u32 %v182, 2147483648
  %v202 = vor.u32 1.1754944e-38, %v201
  %v203 = vsel %vm200, %v202, %v198
  %v204 = vmul.f32 1.0, %v203
  %v205 = vrcp.pop %v183
  %v206 = vmul.f32 %v183, %v205
  %v207 = vsub.f32 1.0, %v206
  %v208 = vmul.f32 %v205, %v207
  %v209 = vadd.f32 %v205, %v208
  %vm210 = vweird.f32 %v183
  %vm211 = vweird.f32 %v205
  %vm212 = vmor %vm210, %vm211
  %v213 = vsel %vm212, %v205, %v209
  %v214 = vand.u32 2147483647, %v183
  %vm215 = vcmp.eq.f32.partialorder %v214, 8.507059e+37
  %v216 = vand.u32 %v183, 2147483648
  %v217 = vor.u32 1.1754944e-38, %v216
  %v218 = vsel %vm215, %v217, %v213
  %v219 = vmul.f32 1.0, %v218
  %v220 = vrcp.pop %v184
  %v221 = vmul.f32 %v184, %v220
  %v222 = vsub.f32 1.0, %v221
  %v223 = vmul.f32 %v220, %v222
  %v224 = vadd.f32 %v220, %v223
  %vm225 = vweird.f32 %v184
  %vm226 = vweird.f32 %v220
  %vm227 = vmor %vm225, %vm226
  %v228 = vsel %vm227, %v220, %v224
  %v229 = vand.u32 2147483647, %v184
  %vm230 = vcmp.eq.f32.partialorder %v229, 8.507059e+37
  %v231 = vand.u32 %v184, 2147483648
  %v232 = vor.u32 1.1754944e-38, %v231
  %v233 = vsel %vm230, %v232, %v228
  %v234 = vmul.f32 1.0, %v233
  %v235 = vrcp.pop %v185
  %v236 = vmul.f32 %v185, %v235
  %v237 = vsub.f32 1.0, %v236
  %v238 = vmul.f32 %v235, %v237
  %v239 = vadd.f32 %v235, %v238
  %vm240 = vweird.f32 %v185
  %vm241 = vweird.f32 %v235
  %vm242 = vmor %vm240, %vm241
  %v243 = vsel %vm242, %v235, %v239
  %v244 = vand.u32 2147483647, %v185
  %vm245 = vcmp.eq.f32.partialorder %v244, 8.507059e+37
  %v246 = vand.u32 %v185, 2147483648
  %v247 = vor.u32 1.1754944e-38, %v246
  %v248 = vsel %vm245, %v247, %v243
  %v249 = vmul.f32 1.0, %v248
  %v250 = vrcp.pop %v186
  %v251 = vmul.f32 %v186, %v250
  %v252 = vsub.f32 1.0, %v251
  %v253 = vmul.f32 %v250, %v252
  %v254 = vadd.f32 %v250, %v253
  %vm255 = vweird.f32 %v186
  %vm256 = vweird.f32 %v250
  %vm257 = vmor %vm255, %vm256
  %v258 = vsel %vm257, %v250, %v254
  %v259 = vand.u32 2147483647, %v186
  %vm260 = vcmp.eq.f32.partialorder %v259, 8.507059e+37
  %v261 = vand.u32 %v186, 2147483648
  %v262 = vor.u32 1.1754944e-38, %v261
  %v263 = vsel %vm260, %v262, %v258
  %v264 = vmul.f32 1.0, %v263
  %v265 = vrcp.pop %v187
  %v266 = vmul.f32 %v187, %v265
  %v267 = vsub.f32 1.0, %v266
  %v268 = vmul.f32 %v265, %v267
  %v269 = vadd.f32 %v265, %v268
  %vm270 = vweird.f32 %v187
  %vm271 = vweird.f32 %v265
  %vm272 = vmor %vm270, %vm271
  %v273 = vsel %vm272, %v265, %v269
  %v274 = vand.u32 2147483647, %v187
  %vm275 = vcmp.eq.f32.partialorder %v274, 8.507059e+37
  %v276 = vand.u32 %v187, 2147483648
  %v277 = vor.u32 1.1754944e-38, %v276
  %v278 = vsel %vm275, %v277, %v273
  %v279 = vmul.f32 1.0, %v278
  %v280 = vrcp.pop %v188
  %v281 = vmul.f32 %v188, %v280
  %v282 = vsub.f32 1.0, %v281
  %v283 = vmul.f32 %v280, %v282
  %v284 = vadd.f32 %v280, %v283
  %vm285 = vweird.f32 %v188
  %vm286 = vweird.f32 %v280
  %vm287 = vmor %vm285, %vm286
  %v288 = vsel %vm287, %v280, %v284
  %v289 = vand.u32 2147483647, %v188
  %vm290 = vcmp.eq.f32.partialorder %v289, 8.507059e+37
  %v291 = vand.u32 %v188, 2147483648
  %v292 = vor.u32 1.1754944e-38, %v291
  %v293 = vsel %vm290, %v292, %v288
  %v294 = vmul.f32 1.0, %v293
  %v295 = vrcp.pop %v189
  %v296 = vmul.f32 %v189, %v295
  %v297 = vsub.f32 1.0, %v296
  %v298 = vmul.f32 %v295, %v297
  %v299 = vadd.f32 %v295, %v298
  %vm300 = vweird.f32 %v189
  %vm301 = vweird.f32 %v295
  %vm302 = vmor %vm300, %vm301
  %v303 = vsel %vm302, %v295, %v299
  %v304 = vand.u32 2147483647, %v189
  %vm305 = vcmp.eq.f32.partialorder %v304, 8.507059e+37
  %v306 = vand.u32 %v189, 2147483648
  %v307 = vor.u32 1.1754944e-38, %v306
  %v308 = vsel %vm305, %v307, %v303
  %v309 = vmul.f32 1.0, %v308
  %v310 = vtanh.pop %v150
  %v311 = vtanh.pop %v151
  %v312 = vtanh.pop %v152
  %v313 = vtanh.pop %v153
  %v314 = vtanh.pop %v154
  %v315 = vtanh.pop %v155
  %v316 = vtanh.pop %v156
  %v317 = vtanh.pop %v157
  %v318 = vmul.f32 %v204, 0.0
  %v319 = vmul.f32 %v219, 0.0
  %v320 = vmul.f32 %v234, 0.0
  %v321 = vmul.f32 %v249, 0.0
  %v322 = vmul.f32 %v264, 0.0
  %v323 = vmul.f32 %v279, 0.0
  %v324 = vmul.f32 %v294, 0.0
  %v325 = vmul.f32 %v309, 0.0
  %334 = vrot.lane.b32.xlu0 %v310, 32
  %v335 = vpop.permute.xlu0 %334
  %336 = vrot.lane.b32.xlu0 %v311, 32
  %v337 = vpop.permute.xlu0 %336
  %338 = vrot.lane.b32.xlu0 %v312, 32
  %v339 = vpop.permute.xlu0 %338
  %340 = vrot.lane.b32.xlu0 %v313, 32
  %v341 = vpop.permute.xlu0 %340
  %342 = vrot.lane.b32.xlu0 %v314, 32
  %v343 = vpop.permute.xlu0 %342
  %344 = vrot.lane.b32.xlu0 %v315, 32
  %v345 = vpop.permute.xlu0 %344
  %346 = vrot.lane.b32.xlu0 %v316, 32
  %v347 = vpop.permute.xlu0 %346
  %348 = vrot.lane.b32.xlu0 %v317, 32
  %v349 = vpop.permute.xlu0 %348
  %v358 = vmul.f32 %v204, %v335
  %v359 = vmul.f32 %v219, %v337
  %v360 = vmul.f32 %v234, %v339
  %v361 = vmul.f32 %v249, %v341
  %v362 = vmul.f32 %v264, %v343
  %v363 = vmul.f32 %v279, %v345
  %v364 = vmul.f32 %v294, %v347
  %v365 = vmul.f32 %v309, %v349
  %374 = vrot.lane.b32.xlu0 %v358, 32
  %v375 = vpop.permute.xlu0 %374
  %376 = vrot.lane.b32.xlu0 %v359, 32
  %v377 = vpop.permute.xlu0 %376
  %378 = vrot.lane.b32.xlu0 %v360, 32
  %v379 = vpop.permute.xlu0 %378
  %380 = vrot.lane.b32.xlu0 %v361, 32
  %v381 = vpop.permute.xlu0 %380
  %382 = vrot.lane.b32.xlu0 %v362, 32
  %v383 = vpop.permute.xlu0 %382
  %384 = vrot.lane.b32.xlu0 %v363, 32
  %v385 = vpop.permute.xlu0 %384
  %386 = vrot.lane.b32.xlu0 %v364, 32
  %v387 = vpop.permute.xlu0 %386
  %388 = vrot.lane.b32.xlu0 %v365, 32
  %v389 = vpop.permute.xlu0 %388
  %v398 = vadd.f32 %v318, %v375
  %v399 = vadd.f32 %v319, %v377
  %v400 = vadd.f32 %v320, %v379
  %v401 = vadd.f32 %v321, %v381
  %v402 = vadd.f32 %v322, %v383
  %v403 = vadd.f32 %v323, %v385
  %v404 = vadd.f32 %v324, %v387
  %v405 = vadd.f32 %v325, %v389
  %v406 = vtanh.pop %v398
  %v407 = vtanh.pop %v399
  %v408 = vtanh.pop %v400
  %v409 = vtanh.pop %v401
  %v410 = vtanh.pop %v402
  %v411 = vtanh.pop %v403
  %v412 = vtanh.pop %v404
  %v413 = vtanh.pop %v405
  %422 = vrot.lane.b32.xlu0 %v406, 32
  %v423 = vpop.permute.xlu0 %422
  %424 = vrot.lane.b32.xlu0 %v407, 32
  %v425 = vpop.permute.xlu0 %424
  %426 = vrot.lane.b32.xlu0 %v408, 32
  %v427 = vpop.permute.xlu0 %426
  %428 = vrot.lane.b32.xlu0 %v409, 32
  %v429 = vpop.permute.xlu0 %428
  %430 = vrot.lane.b32.xlu0 %v410, 32
  %v431 = vpop.permute.xlu0 %430
  %432 = vrot.lane.b32.xlu0 %v411, 32
  %v433 = vpop.permute.xlu0 %432
  %434 = vrot.lane.b32.xlu0 %v412, 32
  %v435 = vpop.permute.xlu0 %434
  %436 = vrot.lane.b32.xlu0 %v413, 32
  %v437 = vpop.permute.xlu0 %436
  %v446 = vmul.f32 %v204, %v423
  %v447 = vmul.f32 %v219, %v425
  %v448 = vmul.f32 %v234, %v427
  %v449 = vmul.f32 %v249, %v429
  %v450 = vmul.f32 %v264, %v431
  %v451 = vmul.f32 %v279, %v433
  %v452 = vmul.f32 %v294, %v435
  %v453 = vmul.f32 %v309, %v437
  %v462 = vrot.slane %v447, 7
  %vm463 = vcmask 1041409
  %v464 = vsel %vm463, %v462, %v446
  %v465 = vrot.slane %v448, 6
  %vm466 = vcmask 1042434
  %v467 = vsel %vm466, %v465, %v464
  %v468 = vrot.slane %v449, 5
  %vm469 = vcmask 1043459
  %v470 = vsel %vm469, %v468, %v467
  %v471 = vrot.slane %v450, 4
  %vm472 = vcmask 1044484
  %v473 = vsel %vm472, %v471, %v470
  %v474 = vrot.slane %v451, 3
  %vm475 = vcmask 1045509
  %v476 = vsel %vm475, %v474, %v473
  %v477 = vrot.slane %v452, 2
  %vm478 = vcmask 1046534
  %v479 = vsel %vm478, %v477, %v476
  %v480 = vrot.slane %v453, 1
  %vm481 = vcmask 1047559
  %v482 = vsel %vm481, %v480, %v479
  %483 = vrot.lane.b32.xlu0 %v482, 64
  %v484 = vpop.permute.xlu0 %483
  %v485 = vsel %vm110, %v484, 0
  %487 = vmatpush.msra.mxu0 0.0
  %488 = vmatpush.msra.mxu0 0.0
  %489 = vmatpush.msra.mxu0 0.0
  %490 = vmatpush.msra.mxu0 0.0
  %491 = vmatpush.msra.mxu0 0.0
  %492 = vmatpush.msra.mxu0 0.0
  %493 = vmatpush.msra.mxu0 0.0
  %494 = vmatpush.msra.mxu0 0.0
  %495 = vmatpush.msra.mxu0 0.0
  %496 = vmatpush.msra.mxu0 0.0
  %497 = vmatpush.msra.mxu0 0.0
  %498 = vmatpush.msra.mxu0 0.0
  %499 = vmatpush.msra.mxu0 %v109
  %500 = vmatpush.msra.mxu0 %v108
  %501 = vmatpush.msra.mxu0 %v107
  %502 = vmatpush.msra.mxu0 %v106
  %503 = vmatmul.f32.gmra.mxu0 %v485
  %v504 = vpop.f32.mrf.mxu0
  %v505 = vadd.f32 0.0, %v504
  %506 = vdwg.mxu0
  %v508 = vrot.slane %v505, 7
  %v509 = vrot.slane %v505, 1
  %v510 = vrot.slane %v505, 2
  %v511 = vrot.slane %v505, 3
  %v512 = vrot.slane %v505, 4
  %v513 = vrot.slane %v505, 5
  %v514 = vrot.slane %v505, 6
  %v523 = vadd.f32 %v83, %v508
  %v524 = vadd.f32 %v86, %v505
  %v525 = vadd.f32 %v89, %v509
  %v526 = vadd.f32 %v92, %v510
  %v527 = vadd.f32 %v95, %v511
  %v528 = vadd.f32 %v98, %v512
  %v529 = vadd.f32 %v101, %v513
  %v530 = vadd.f32 %v104, %v514
  %v531 = vxor.u32 %v523, 2147483648
  %v532 = vxor.u32 %v524, 2147483648
  %v533 = vxor.u32 %v525, 2147483648
  %v534 = vxor.u32 %v526, 2147483648
  %v535 = vxor.u32 %v527, 2147483648
  %v536 = vxor.u32 %v528, 2147483648
  %v537 = vxor.u32 %v529, 2147483648
  %v538 = vxor.u32 %v530, 2147483648
  %v539 = vmul.f32 %v531, 1.442695
  %v540 = vpow.pop %v539
  %v541 = vmul.f32 %v532, 1.442695
  %v542 = vpow.pop %v541
  %v543 = vmul.f32 %v533, 1.442695
  %v544 = vpow.pop %v543
  %v545 = vmul.f32 %v534, 1.442695
  %v546 = vpow.pop %v545
  %v547 = vmul.f32 %v535, 1.442695
  %v548 = vpow.pop %v547
  %v549 = vmul.f32 %v536, 1.442695
  %v550 = vpow.pop %v549
  %v551 = vmul.f32 %v537, 1.442695
  %v552 = vpow.pop %v551
  %v553 = vmul.f32 %v538, 1.442695
  %v554 = vpow.pop %v553
  %v555 = vadd.f32 %v540, 1.0
  %v556 = vadd.f32 %v542, 1.0
  %v557 = vadd.f32 %v544, 1.0
  %v558 = vadd.f32 %v546, 1.0
  %v559 = vadd.f32 %v548, 1.0
  %v560 = vadd.f32 %v550, 1.0
  %v561 = vadd.f32 %v552, 1.0
  %v562 = vadd.f32 %v554, 1.0
  %v563 = vrcp.pop %v555
  %v564 = vmul.f32 %v555, %v563
  %v565 = vsub.f32 1.0, %v564
  %v566 = vmul.f32 %v563, %v565
  %v567 = vadd.f32 %v563, %v566
  %vm568 = vweird.f32 %v555
  %vm569 = vweird.f32 %v563
  %vm570 = vmor %vm568, %vm569
  %v571 = vsel %vm570, %v563, %v567
  %v572 = vand.u32 2147483647, %v555
  %vm573 = vcmp.eq.f32.partialorder %v572, 8.507059e+37
  %v574 = vand.u32 %v555, 2147483648
  %v575 = vor.u32 1.1754944e-38, %v574
  %v576 = vsel %vm573, %v575, %v571
  %v577 = vmul.f32 1.0, %v576
  %v578 = vrcp.pop %v556
  %v579 = vmul.f32 %v556, %v578
  %v580 = vsub.f32 1.0, %v579
  %v581 = vmul.f32 %v578, %v580
  %v582 = vadd.f32 %v578, %v581
  %vm583 = vweird.f32 %v556
  %vm584 = vweird.f32 %v578
  %vm585 = vmor %vm583, %vm584
  %v586 = vsel %vm585, %v578, %v582
  %v587 = vand.u32 2147483647, %v556
  %vm588 = vcmp.eq.f32.partialorder %v587, 8.507059e+37
  %v589 = vand.u32 %v556, 2147483648
  %v590 = vor.u32 1.1754944e-38, %v589
  %v591 = vsel %vm588, %v590, %v586
  %v592 = vmul.f32 1.0, %v591
  %v593 = vrcp.pop %v557
  %v594 = vmul.f32 %v557, %v593
  %v595 = vsub.f32 1.0, %v594
  %v596 = vmul.f32 %v593, %v595
  %v597 = vadd.f32 %v593, %v596
  %vm598 = vweird.f32 %v557
  %vm599 = vweird.f32 %v593
  %vm600 = vmor %vm598, %vm599
  %v601 = vsel %vm600, %v593, %v597
  %v602 = vand.u32 2147483647, %v557
  %vm603 = vcmp.eq.f32.partialorder %v602, 8.507059e+37
  %v604 = vand.u32 %v557, 2147483648
  %v605 = vor.u32 1.1754944e-38, %v604
  %v606 = vsel %vm603, %v605, %v601
  %v607 = vmul.f32 1.0, %v606
  %v608 = vrcp.pop %v558
  %v609 = vmul.f32 %v558, %v608
  %v610 = vsub.f32 1.0, %v609
  %v611 = vmul.f32 %v608, %v610
  %v612 = vadd.f32 %v608, %v611
  %vm613 = vweird.f32 %v558
  %vm614 = vweird.f32 %v608
  %vm615 = vmor %vm613, %vm614
  %v616 = vsel %vm615, %v608, %v612
  %v617 = vand.u32 2147483647, %v558
  %vm618 = vcmp.eq.f32.partialorder %v617, 8.507059e+37
  %v619 = vand.u32 %v558, 2147483648
  %v620 = vor.u32 1.1754944e-38, %v619
  %v621 = vsel %vm618, %v620, %v616
  %v622 = vmul.f32 1.0, %v621
  %v623 = vrcp.pop %v559
  %v624 = vmul.f32 %v559, %v623
  %v625 = vsub.f32 1.0, %v624
  %v626 = vmul.f32 %v623, %v625
  %v627 = vadd.f32 %v623, %v626
  %vm628 = vweird.f32 %v559
  %vm629 = vweird.f32 %v623
  %vm630 = vmor %vm628, %vm629
  %v631 = vsel %vm630, %v623, %v627
  %v632 = vand.u32 2147483647, %v559
  %vm633 = vcmp.eq.f32.partialorder %v632, 8.507059e+37
  %v634 = vand.u32 %v559, 2147483648
  %v635 = vor.u32 1.1754944e-38, %v634
  %v636 = vsel %vm633, %v635, %v631
  %v637 = vmul.f32 1.0, %v636
  %v638 = vrcp.pop %v560
  %v639 = vmul.f32 %v560, %v638
  %v640 = vsub.f32 1.0, %v639
  %v641 = vmul.f32 %v638, %v640
  %v642 = vadd.f32 %v638, %v641
  %vm643 = vweird.f32 %v560
  %vm644 = vweird.f32 %v638
  %vm645 = vmor %vm643, %vm644
  %v646 = vsel %vm645, %v638, %v642
  %v647 = vand.u32 2147483647, %v560
  %vm648 = vcmp.eq.f32.partialorder %v647, 8.507059e+37
  %v649 = vand.u32 %v560, 2147483648
  %v650 = vor.u32 1.1754944e-38, %v649
  %v651 = vsel %vm648, %v650, %v646
  %v652 = vmul.f32 1.0, %v651
  %v653 = vrcp.pop %v561
  %v654 = vmul.f32 %v561, %v653
  %v655 = vsub.f32 1.0, %v654
  %v656 = vmul.f32 %v653, %v655
  %v657 = vadd.f32 %v653, %v656
  %vm658 = vweird.f32 %v561
  %vm659 = vweird.f32 %v653
  %vm660 = vmor %vm658, %vm659
  %v661 = vsel %vm660, %v653, %v657
  %v662 = vand.u32 2147483647, %v561
  %vm663 = vcmp.eq.f32.partialorder %v662, 8.507059e+37
  %v664 = vand.u32 %v561, 2147483648
  %v665 = vor.u32 1.1754944e-38, %v664
  %v666 = vsel %vm663, %v665, %v661
  %v667 = vmul.f32 1.0, %v666
  %v668 = vrcp.pop %v562
  %v669 = vmul.f32 %v562, %v668
  %v670 = vsub.f32 1.0, %v669
  %v671 = vmul.f32 %v668, %v670
  %v672 = vadd.f32 %v668, %v671
  %vm673 = vweird.f32 %v562
  %vm674 = vweird.f32 %v668
  %vm675 = vmor %vm673, %vm674
  %v676 = vsel %vm675, %v668, %v672
  %v677 = vand.u32 2147483647, %v562
  %vm678 = vcmp.eq.f32.partialorder %v677, 8.507059e+37
  %v679 = vand.u32 %v562, 2147483648
  %v680 = vor.u32 1.1754944e-38, %v679
  %v681 = vsel %vm678, %v680, %v676
  %v682 = vmul.f32 1.0, %v681
  %v683 = vtanh.pop %v523
  %v684 = vtanh.pop %v524
  %v685 = vtanh.pop %v525
  %v686 = vtanh.pop %v526
  %v687 = vtanh.pop %v527
  %v688 = vtanh.pop %v528
  %v689 = vtanh.pop %v529
  %v690 = vtanh.pop %v530
  %v699 = vrot.slane %v398, 7
  %v700 = vrot.slane %v399, 7
  %v701 = vrot.slane %v400, 7
  %v702 = vrot.slane %v401, 7
  %v703 = vrot.slane %v402, 7
  %v704 = vrot.slane %v403, 7
  %v705 = vrot.slane %v404, 7
  %v706 = vrot.slane %v405, 7
  %v715 = vmul.f32 %v577, %v699
  %v716 = vmul.f32 %v592, %v700
  %v717 = vmul.f32 %v607, %v701
  %v718 = vmul.f32 %v622, %v702
  %v719 = vmul.f32 %v637, %v703
  %v720 = vmul.f32 %v652, %v704
  %v721 = vmul.f32 %v667, %v705
  %v722 = vmul.f32 %v682, %v706
  %731 = vrot.lane.b32.xlu0 %v683, 32
  %v732 = vpop.permute.xlu0 %731
  %733 = vrot.lane.b32.xlu0 %v684, 32
  %v734 = vpop.permute.xlu0 %733
  %735 = vrot.lane.b32.xlu0 %v685, 32
  %v736 = vpop.permute.xlu0 %735
  %737 = vrot.lane.b32.xlu0 %v686, 32
  %v738 = vpop.permute.xlu0 %737
  %739 = vrot.lane.b32.xlu0 %v687, 32
  %v740 = vpop.permute.xlu0 %739
  %741 = vrot.lane.b32.xlu0 %v688, 32
  %v742 = vpop.permute.xlu0 %741
  %743 = vrot.lane.b32.xlu0 %v689, 32
  %v744 = vpop.permute.xlu0 %743
  %745 = vrot.lane.b32.xlu0 %v690, 32
  %v746 = vpop.permute.xlu0 %745
  %v755 = vmul.f32 %v577, %v732
  %v756 = vmul.f32 %v592, %v734
  %v757 = vmul.f32 %v607, %v736
  %v758 = vmul.f32 %v622, %v738
  %v759 = vmul.f32 %v637, %v740
  %v760 = vmul.f32 %v652, %v742
  %v761 = vmul.f32 %v667, %v744
  %v762 = vmul.f32 %v682, %v746
  %771 = vrot.lane.b32.xlu0 %v755, 32
  %v772 = vpop.permute.xlu0 %771
  %773 = vrot.lane.b32.xlu0 %v756, 32
  %v774 = vpop.permute.xlu0 %773
  %775 = vrot.lane.b32.xlu0 %v757, 32
  %v776 = vpop.permute.xlu0 %775
  %777 = vrot.lane.b32.xlu0 %v758, 32
  %v778 = vpop.permute.xlu0 %777
  %779 = vrot.lane.b32.xlu0 %v759, 32
  %v780 = vpop.permute.xlu0 %779
  %781 = vrot.lane.b32.xlu0 %v760, 32
  %v782 = vpop.permute.xlu0 %781
  %783 = vrot.lane.b32.xlu0 %v761, 32
  %v784 = vpop.permute.xlu0 %783
  %785 = vrot.lane.b32.xlu0 %v762, 32
  %v786 = vpop.permute.xlu0 %785
  %v795 = vadd.f32 %v715, %v772
  %v796 = vadd.f32 %v716, %v774
  %v797 = vadd.f32 %v717, %v776
  %v798 = vadd.f32 %v718, %v778
  %v799 = vadd.f32 %v719, %v780
  %v800 = vadd.f32 %v720, %v782
  %v801 = vadd.f32 %v721, %v784
  %v802 = vadd.f32 %v722, %v786
  %v803 = vtanh.pop %v795
  %v804 = vtanh.pop %v796
  %v805 = vtanh.pop %v797
  %v806 = vtanh.pop %v798
  %v807 = vtanh.pop %v799
  %v808 = vtanh.pop %v800
  %v809 = vtanh.pop %v801
  %v810 = vtanh.pop %v802
  %819 = vrot.lane.b32.xlu0 %v803, 32
  %v820 = vpop.permute.xlu0 %819
  %821 = vrot.lane.b32.xlu0 %v804, 32
  %v822 = vpop.permute.xlu0 %821
  %823 = vrot.lane.b32.xlu0 %v805, 32
  %v824 = vpop.permute.xlu0 %823
  %825 = vrot.lane.b32.xlu0 %v806, 32
  %v826 = vpop.permute.xlu0 %825
  %827 = vrot.lane.b32.xlu0 %v807, 32
  %v828 = vpop.permute.xlu0 %827
  %829 = vrot.lane.b32.xlu0 %v808, 32
  %v830 = vpop.permute.xlu0 %829
  %831 = vrot.lane.b32.xlu0 %v809, 32
  %v832 = vpop.permute.xlu0 %831
  %833 = vrot.lane.b32.xlu0 %v810, 32
  %v834 = vpop.permute.xlu0 %833
  %v843 = vmul.f32 %v577, %v820
  %v844 = vmul.f32 %v592, %v822
  %v845 = vmul.f32 %v607, %v824
  %v846 = vmul.f32 %v622, %v826
  %v847 = vmul.f32 %v637, %v828
  %v848 = vmul.f32 %v652, %v830
  %v849 = vmul.f32 %v667, %v832
  %v850 = vmul.f32 %v682, %v834
  %v859 = vrot.slane %v843, 1
  %v860 = vsel %vm463, %v844, %v859
  %v861 = vrot.slane %v845, 7
  %v862 = vsel %vm466, %v861, %v860
  %v863 = vrot.slane %v846, 6
  %v864 = vsel %vm469, %v863, %v862
  %v865 = vrot.slane %v847, 5
  %v866 = vsel %vm472, %v865, %v864
  %v867 = vrot.slane %v848, 4
  %v868 = vsel %vm475, %v867, %v866
  %v869 = vrot.slane %v849, 3
  %v870 = vsel %vm478, %v869, %v868
  %v871 = vrot.slane %v850, 2
  %v872 = vsel %vm481, %v871, %v870
  %873 = vrot.lane.b32.xlu0 %v872, 64
  %v874 = vpop.permute.xlu0 %873
  %v875 = vsel %vm110, %v874, 0
  %877 = vmatpush.msra.mxu0 0.0
  %878 = vmatpush.msra.mxu0 0.0
  %879 = vmatpush.msra.mxu0 0.0
  %880 = vmatpush.msra.mxu0 0.0
  %881 = vmatpush.msra.mxu0 0.0
  %882 = vmatpush.msra.mxu0 0.0
  %883 = vmatpush.msra.mxu0 0.0
  %884 = vmatpush.msra.mxu0 0.0
  %885 = vmatpush.msra.mxu0 0.0
  %886 = vmatpush.msra.mxu0 0.0
  %887 = vmatpush.msra.mxu0 0.0
  %888 = vmatpush.msra.mxu0 0.0
  %889 = vmatpush.msra.mxu0 %v109
  %890 = vmatpush.msra.mxu0 %v108
  %891 = vmatpush.msra.mxu0 %v107
  %892 = vmatpush.msra.mxu0 %v106
  %893 = vmatmul.f32.gmra.mxu0 %v875
  %v894 = vpop.f32.mrf.mxu0
  %v895 = vadd.f32 0.0, %v894
  %896 = vdwg.mxu0
  %v898 = vrot.slane %v895, 6
  %v899 = vrot.slane %v895, 7
  %v900 = vrot.slane %v895, 1
  %v901 = vrot.slane %v895, 2
  %v902 = vrot.slane %v895, 3
  %v903 = vrot.slane %v895, 4
  %v904 = vrot.slane %v895, 5
  %v913 = vadd.f32 %v83, %v898
  %v914 = vadd.f32 %v86, %v899
  %v915 = vadd.f32 %v89, %v895
  %v916 = vadd.f32 %v92, %v900
  %v917 = vadd.f32 %v95, %v901
  %v918 = vadd.f32 %v98, %v902
  %v919 = vadd.f32 %v101, %v903
  %v920 = vadd.f32 %v104, %v904
  %v921 = vxor.u32 %v913, 2147483648
  %v922 = vxor.u32 %v914, 2147483648
  %v923 = vxor.u32 %v915, 2147483648
  %v924 = vxor.u32 %v916, 2147483648
  %v925 = vxor.u32 %v917, 2147483648
  %v926 = vxor.u32 %v918, 2147483648
  %v927 = vxor.u32 %v919, 2147483648
  %v928 = vxor.u32 %v920, 2147483648
  %v929 = vmul.f32 %v921, 1.442695
  %v930 = vpow.pop %v929
  %v931 = vmul.f32 %v922, 1.442695
  %v932 = vpow.pop %v931
  %v933 = vmul.f32 %v923, 1.442695
  %v934 = vpow.pop %v933
  %v935 = vmul.f32 %v924, 1.442695
  %v936 = vpow.pop %v935
  %v937 = vmul.f32 %v925, 1.442695
  %v938 = vpow.pop %v937
  %v939 = vmul.f32 %v926, 1.442695
  %v940 = vpow.pop %v939
  %v941 = vmul.f32 %v927, 1.442695
  %v942 = vpow.pop %v941
  %v943 = vmul.f32 %v928, 1.442695
  %v944 = vpow.pop %v943
  %v945 = vadd.f32 %v930, 1.0
  %v946 = vadd.f32 %v932, 1.0
  %v947 = vadd.f32 %v934, 1.0
  %v948 = vadd.f32 %v936, 1.0
  %v949 = vadd.f32 %v938, 1.0
  %v950 = vadd.f32 %v940, 1.0
  %v951 = vadd.f32 %v942, 1.0
  %v952 = vadd.f32 %v944, 1.0
  %v953 = vrcp.pop %v945
  %v954 = vmul.f32 %v945, %v953
  %v955 = vsub.f32 1.0, %v954
  %v956 = vmul.f32 %v953, %v955
  %v957 = vadd.f32 %v953, %v956
  %vm958 = vweird.f32 %v945
  %vm959 = vweird.f32 %v953
  %vm960 = vmor %vm958, %vm959
  %v961 = vsel %vm960, %v953, %v957
  %v962 = vand.u32 2147483647, %v945
  %vm963 = vcmp.eq.f32.partialorder %v962, 8.507059e+37
  %v964 = vand.u32 %v945, 2147483648
  %v965 = vor.u32 1.1754944e-38, %v964
  %v966 = vsel %vm963, %v965, %v961
  %v967 = vmul.f32 1.0, %v966
  %v968 = vrcp.pop %v946
  %v969 = vmul.f32 %v946, %v968
  %v970 = vsub.f32 1.0, %v969
  %v971 = vmul.f32 %v968, %v970
  %v972 = vadd.f32 %v968, %v971
  %vm973 = vweird.f32 %v946
  %vm974 = vweird.f32 %v968
  %vm975 = vmor %vm973, %vm974
  %v976 = vsel %vm975, %v968, %v972
  %v977 = vand.u32 2147483647, %v946
  %vm978 = vcmp.eq.f32.partialorder %v977, 8.507059e+37
  %v979 = vand.u32 %v946, 2147483648
  %v980 = vor.u32 1.1754944e-38, %v979
  %v981 = vsel %vm978, %v980, %v976
  %v982 = vmul.f32 1.0, %v981
  %v983 = vrcp.pop %v947
  %v984 = vmul.f32 %v947, %v983
  %v985 = vsub.f32 1.0, %v984
  %v986 = vmul.f32 %v983, %v985
  %v987 = vadd.f32 %v983, %v986
  %vm988 = vweird.f32 %v947
  %vm989 = vweird.f32 %v983
  %vm990 = vmor %vm988, %vm989
  %v991 = vsel %vm990, %v983, %v987
  %v992 = vand.u32 2147483647, %v947
  %vm993 = vcmp.eq.f32.partialorder %v992, 8.507059e+37
  %v994 = vand.u32 %v947, 2147483648
  %v995 = vor.u32 1.1754944e-38, %v994
  %v996 = vsel %vm993, %v995, %v991
  %v997 = vmul.f32 1.0, %v996
  %v998 = vrcp.pop %v948
  %v999 = vmul.f32 %v948, %v998
  %v1000 = vsub.f32 1.0, %v999
  %v1001 = vmul.f32 %v998, %v1000
  %v1002 = vadd.f32 %v998, %v1001
  %vm1003 = vweird.f32 %v948
  %vm1004 = vweird.f32 %v998
  %vm1005 = vmor %vm1003, %vm1004
  %v1006 = vsel %vm1005, %v998, %v1002
  %v1007 = vand.u32 2147483647, %v948
  %vm1008 = vcmp.eq.f32.partialorder %v1007, 8.507059e+37
  %v1009 = vand.u32 %v948, 2147483648
  %v1010 = vor.u32 1.1754944e-38, %v1009
  %v1011 = vsel %vm1008, %v1010, %v1006
  %v1012 = vmul.f32 1.0, %v1011
  %v1013 = vrcp.pop %v949
  %v1014 = vmul.f32 %v949, %v1013
  %v1015 = vsub.f32 1.0, %v1014
  %v1016 = vmul.f32 %v1013, %v1015
  %v1017 = vadd.f32 %v1013, %v1016
  %vm1018 = vweird.f32 %v949
  %vm1019 = vweird.f32 %v1013
  %vm1020 = vmor %vm1018, %vm1019
  %v1021 = vsel %vm1020, %v1013, %v1017
  %v1022 = vand.u32 2147483647, %v949
  %vm1023 = vcmp.eq.f32.partialorder %v1022, 8.507059e+37
  %v1024 = vand.u32 %v949, 2147483648
  %v1025 = vor.u32 1.1754944e-38, %v1024
  %v1026 = vsel %vm1023, %v1025, %v1021
  %v1027 = vmul.f32 1.0, %v1026
  %v1028 = vrcp.pop %v950
  %v1029 = vmul.f32 %v950, %v1028
  %v1030 = vsub.f32 1.0, %v1029
  %v1031 = vmul.f32 %v1028, %v1030
  %v1032 = vadd.f32 %v1028, %v1031
  %vm1033 = vweird.f32 %v950
  %vm1034 = vweird.f32 %v1028
  %vm1035 = vmor %vm1033, %vm1034
  %v1036 = vsel %vm1035, %v1028, %v1032
  %v1037 = vand.u32 2147483647, %v950
  %vm1038 = vcmp.eq.f32.partialorder %v1037, 8.507059e+37
  %v1039 = vand.u32 %v950, 2147483648
  %v1040 = vor.u32 1.1754944e-38, %v1039
  %v1041 = vsel %vm1038, %v1040, %v1036
  %v1042 = vmul.f32 1.0, %v1041
  %v1043 = vrcp.pop %v951
  %v1044 = vmul.f32 %v951, %v1043
  %v1045 = vsub.f32 1.0, %v1044
  %v1046 = vmul.f32 %v1043, %v1045
  %v1047 = vadd.f32 %v1043, %v1046
  %vm1048 = vweird.f32 %v951
  %vm1049 = vweird.f32 %v1043
  %vm1050 = vmor %vm1048, %vm1049
  %v1051 = vsel %vm1050, %v1043, %v1047
  %v1052 = vand.u32 2147483647, %v951
  %vm1053 = vcmp.eq.f32.partialorder %v1052, 8.507059e+37
  %v1054 = vand.u32 %v951, 2147483648
  %v1055 = vor.u32 1.1754944e-38, %v1054
  %v1056 = vsel %vm1053, %v1055, %v1051
  %v1057 = vmul.f32 1.0, %v1056
  %v1058 = vrcp.pop %v952
  %v1059 = vmul.f32 %v952, %v1058
  %v1060 = vsub.f32 1.0, %v1059
  %v1061 = vmul.f32 %v1058, %v1060
  %v1062 = vadd.f32 %v1058, %v1061
  %vm1063 = vweird.f32 %v952
  %vm1064 = vweird.f32 %v1058
  %vm1065 = vmor %vm1063, %vm1064
  %v1066 = vsel %vm1065, %v1058, %v1062
  %v1067 = vand.u32 2147483647, %v952
  %vm1068 = vcmp.eq.f32.partialorder %v1067, 8.507059e+37
  %v1069 = vand.u32 %v952, 2147483648
  %v1070 = vor.u32 1.1754944e-38, %v1069
  %v1071 = vsel %vm1068, %v1070, %v1066
  %v1072 = vmul.f32 1.0, %v1071
  %v1073 = vtanh.pop %v913
  %v1074 = vtanh.pop %v914
  %v1075 = vtanh.pop %v915
  %v1076 = vtanh.pop %v916
  %v1077 = vtanh.pop %v917
  %v1078 = vtanh.pop %v918
  %v1079 = vtanh.pop %v919
  %v1080 = vtanh.pop %v920
  %v1089 = vrot.slane %v795, 7
  %v1090 = vrot.slane %v796, 7
  %v1091 = vrot.slane %v797, 7
  %v1092 = vrot.slane %v798, 7
  %v1093 = vrot.slane %v799, 7
  %v1094 = vrot.slane %v800, 7
  %v1095 = vrot.slane %v801, 7
  %v1096 = vrot.slane %v802, 7
  %v1105 = vmul.f32 %v967, %v1089
  %v1106 = vmul.f32 %v982, %v1090
  %v1107 = vmul.f32 %v997, %v1091
  %v1108 = vmul.f32 %v1012, %v1092
  %v1109 = vmul.f32 %v1027, %v1093
  %v1110 = vmul.f32 %v1042, %v1094
  %v1111 = vmul.f32 %v1057, %v1095
  %v1112 = vmul.f32 %v1072, %v1096
  %1121 = vrot.lane.b32.xlu0 %v1073, 32
  %v1122 = vpop.permute.xlu0 %1121
  %1123 = vrot.lane.b32.xlu0 %v1074, 32
  %v1124 = vpop.permute.xlu0 %1123
  %1125 = vrot.lane.b32.xlu0 %v1075, 32
  %v1126 = vpop.permute.xlu0 %1125
  %1127 = vrot.lane.b32.xlu0 %v1076, 32
  %v1128 = vpop.permute.xlu0 %1127
  %1129 = vrot.lane.b32.xlu0 %v1077, 32
  %v1130 = vpop.permute.xlu0 %1129
  %1131 = vrot.lane.b32.xlu0 %v1078, 32
  %v1132 = vpop.permute.xlu0 %1131
  %1133 = vrot.lane.b32.xlu0 %v1079, 32
  %v1134 = vpop.permute.xlu0 %1133
  %1135 = vrot.lane.b32.xlu0 %v1080, 32
  %v1136 = vpop.permute.xlu0 %1135
  %v1145 = vmul.f32 %v967, %v1122
  %v1146 = vmul.f32 %v982, %v1124
  %v1147 = vmul.f32 %v997, %v1126
  %v1148 = vmul.f32 %v1012, %v1128
  %v1149 = vmul.f32 %v1027, %v1130
  %v1150 = vmul.f32 %v1042, %v1132
  %v1151 = vmul.f32 %v1057, %v1134
  %v1152 = vmul.f32 %v1072, %v1136
  %1161 = vrot.lane.b32.xlu0 %v1145, 32
  %v1162 = vpop.permute.xlu0 %1161
  %1163 = vrot.lane.b32.xlu0 %v1146, 32
  %v1164 = vpop.permute.xlu0 %1163
  %1165 = vrot.lane.b32.xlu0 %v1147, 32
  %v1166 = vpop.permute.xlu0 %1165
  %1167 = vrot.lane.b32.xlu0 %v1148, 32
  %v1168 = vpop.permute.xlu0 %1167
  %1169 = vrot.lane.b32.xlu0 %v1149, 32
  %v1170 = vpop.permute.xlu0 %1169
  %1171 = vrot.lane.b32.xlu0 %v1150, 32
  %v1172 = vpop.permute.xlu0 %1171
  %1173 = vrot.lane.b32.xlu0 %v1151, 32
  %v1174 = vpop.permute.xlu0 %1173
  %1175 = vrot.lane.b32.xlu0 %v1152, 32
  %v1176 = vpop.permute.xlu0 %1175
  %v1185 = vadd.f32 %v1105, %v1162
  %v1186 = vadd.f32 %v1106, %v1164
  %v1187 = vadd.f32 %v1107, %v1166
  %v1188 = vadd.f32 %v1108, %v1168
  %v1189 = vadd.f32 %v1109, %v1170
  %v1190 = vadd.f32 %v1110, %v1172
  %v1191 = vadd.f32 %v1111, %v1174
  %v1192 = vadd.f32 %v1112, %v1176
  %v1193 = vtanh.pop %v1185
  %v1194 = vtanh.pop %v1186
  %v1195 = vtanh.pop %v1187
  %v1196 = vtanh.pop %v1188
  %v1197 = vtanh.pop %v1189
  %v1198 = vtanh.pop %v1190
  %v1199 = vtanh.pop %v1191
  %v1200 = vtanh.pop %v1192
  %1209 = vrot.lane.b32.xlu0 %v1193, 32
  %v1210 = vpop.permute.xlu0 %1209
  %1211 = vrot.lane.b32.xlu0 %v1194, 32
  %v1212 = vpop.permute.xlu0 %1211
  %1213 = vrot.lane.b32.xlu0 %v1195, 32
  %v1214 = vpop.permute.xlu0 %1213
  %1215 = vrot.lane.b32.xlu0 %v1196, 32
  %v1216 = vpop.permute.xlu0 %1215
  %1217 = vrot.lane.b32.xlu0 %v1197, 32
  %v1218 = vpop.permute.xlu0 %1217
  %1219 = vrot.lane.b32.xlu0 %v1198, 32
  %v1220 = vpop.permute.xlu0 %1219
  %1221 = vrot.lane.b32.xlu0 %v1199, 32
  %v1222 = vpop.permute.xlu0 %1221
  %1223 = vrot.lane.b32.xlu0 %v1200, 32
  %v1224 = vpop.permute.xlu0 %1223
  %v1233 = vmul.f32 %v967, %v1210
  %v1234 = vmul.f32 %v982, %v1212
  %v1235 = vmul.f32 %v997, %v1214
  %v1236 = vmul.f32 %v1012, %v1216
  %v1237 = vmul.f32 %v1027, %v1218
  %v1238 = vmul.f32 %v1042, %v1220
  %v1239 = vmul.f32 %v1057, %v1222
  %v1240 = vmul.f32 %v1072, %v1224
  %v1249 = vrot.slane %v1233, 2
  %v1250 = vrot.slane %v1234, 1
  %v1251 = vsel %vm463, %v1250, %v1249
  %v1252 = vsel %vm466, %v1235, %v1251
  %v1253 = vrot.slane %v1236, 7
  %v1254 = vsel %vm469, %v1253, %v1252
  %v1255 = vrot.slane %v1237, 6
  %v1256 = vsel %vm472, %v1255, %v1254
  %v1257 = vrot.slane %v1238, 5
  %v1258 = vsel %vm475, %v1257, %v1256
  %v1259 = vrot.slane %v1239, 4
  %v1260 = vsel %vm478, %v1259, %v1258
  %v1261 = vrot.slane %v1240, 3
  %v1262 = vsel %vm481, %v1261, %v1260
  %1263 = vrot.lane.b32.xlu0 %v1262, 64
  %v1264 = vpop.permute.xlu0 %1263
  %v1265 = vsel %vm110, %v1264, 0
  %1267 = vmatpush.msra.mxu0 0.0
  %1268 = vmatpush.msra.mxu0 0.0
  %1269 = vmatpush.msra.mxu0 0.0
  %1270 = vmatpush.msra.mxu0 0.0
  %1271 = vmatpush.msra.mxu0 0.0
  %1272 = vmatpush.msra.mxu0 0.0
  %1273 = vmatpush.msra.mxu0 0.0
  %1274 = vmatpush.msra.mxu0 0.0
  %1275 = vmatpush.msra.mxu0 0.0
  %1276 = vmatpush.msra.mxu0 0.0
  %1277 = vmatpush.msra.mxu0 0.0
  %1278 = vmatpush.msra.mxu0 0.0
  %1279 = vmatpush.msra.mxu0 %v109
  %1280 = vmatpush.msra.mxu0 %v108
  %1281 = vmatpush.msra.mxu0 %v107
  %1282 = vmatpush.msra.mxu0 %v106
  %1283 = vmatmul.f32.gmra.mxu0 %v1265
  %v1284 = vpop.f32.mrf.mxu0
  %v1285 = vadd.f32 0.0, %v1284
  %1286 = vdwg.mxu0
  %v1288 = vrot.slane %v1285, 5
  %v1289 = vrot.slane %v1285, 6
  %v1290 = vrot.slane %v1285, 7
  %v1291 = vrot.slane %v1285, 1
  %v1292 = vrot.slane %v1285, 2
  %v1293 = vrot.slane %v1285, 3
  %v1294 = vrot.slane %v1285, 4
  %v1303 = vadd.f32 %v83, %v1288
  %v1304 = vadd.f32 %v86, %v1289
  %v1305 = vadd.f32 %v89, %v1290
  %v1306 = vadd.f32 %v92, %v1285
  %v1307 = vadd.f32 %v95, %v1291
  %v1308 = vadd.f32 %v98, %v1292
  %v1309 = vadd.f32 %v101, %v1293
  %v1310 = vadd.f32 %v104, %v1294
  %v1311 = vxor.u32 %v1303, 2147483648
  %v1312 = vxor.u32 %v1304, 2147483648
  %v1313 = vxor.u32 %v1305, 2147483648
  %v1314 = vxor.u32 %v1306, 2147483648
  %v1315 = vxor.u32 %v1307, 2147483648
  %v1316 = vxor.u32 %v1308, 2147483648
  %v1317 = vxor.u32 %v1309, 2147483648
  %v1318 = vxor.u32 %v1310, 2147483648
  %v1319 = vmul.f32 %v1311, 1.442695
  %v1320 = vpow.pop %v1319
  %v1321 = vmul.f32 %v1312, 1.442695
  %v1322 = vpow.pop %v1321
  %v1323 = vmul.f32 %v1313, 1.442695
  %v1324 = vpow.pop %v1323
  %v1325 = vmul.f32 %v1314, 1.442695
  %v1326 = vpow.pop %v1325
  %v1327 = vmul.f32 %v1315, 1.442695
  %v1328 = vpow.pop %v1327
  %v1329 = vmul.f32 %v1316, 1.442695
  %v1330 = vpow.pop %v1329
  %v1331 = vmul.f32 %v1317, 1.442695
  %v1332 = vpow.pop %v1331
  %v1333 = vmul.f32 %v1318, 1.442695
  %v1334 = vpow.pop %v1333
  %v1335 = vadd.f32 %v1320, 1.0
  %v1336 = vadd.f32 %v1322, 1.0
  %v1337 = vadd.f32 %v1324, 1.0
  %v1338 = vadd.f32 %v1326, 1.0
  %v1339 = vadd.f32 %v1328, 1.0
  %v1340 = vadd.f32 %v1330, 1.0
  %v1341 = vadd.f32 %v1332, 1.0
  %v1342 = vadd.f32 %v1334, 1.0
  %v1343 = vrcp.pop %v1335
  %v1344 = vmul.f32 %v1335, %v1343
  %v1345 = vsub.f32 1.0, %v1344
  %v1346 = vmul.f32 %v1343, %v1345
  %v1347 = vadd.f32 %v1343, %v1346
  %vm1348 = vweird.f32 %v1335
  %vm1349 = vweird.f32 %v1343
  %vm1350 = vmor %vm1348, %vm1349
  %v1351 = vsel %vm1350, %v1343, %v1347
  %v1352 = vand.u32 2147483647, %v1335
  %vm1353 = vcmp.eq.f32.partialorder %v1352, 8.507059e+37
  %v1354 = vand.u32 %v1335, 2147483648
  %v1355 = vor.u32 1.1754944e-38, %v1354
  %v1356 = vsel %vm1353, %v1355, %v1351
  %v1357 = vmul.f32 1.0, %v1356
  %v1358 = vrcp.pop %v1336
  %v1359 = vmul.f32 %v1336, %v1358
  %v1360 = vsub.f32 1.0, %v1359
  %v1361 = vmul.f32 %v1358, %v1360
  %v1362 = vadd.f32 %v1358, %v1361
  %vm1363 = vweird.f32 %v1336
  %vm1364 = vweird.f32 %v1358
  %vm1365 = vmor %vm1363, %vm1364
  %v1366 = vsel %vm1365, %v1358, %v1362
  %v1367 = vand.u32 2147483647, %v1336
  %vm1368 = vcmp.eq.f32.partialorder %v1367, 8.507059e+37
  %v1369 = vand.u32 %v1336, 2147483648
  %v1370 = vor.u32 1.1754944e-38, %v1369
  %v1371 = vsel %vm1368, %v1370, %v1366
  %v1372 = vmul.f32 1.0, %v1371
  %v1373 = vrcp.pop %v1337
  %v1374 = vmul.f32 %v1337, %v1373
  %v1375 = vsub.f32 1.0, %v1374
  %v1376 = vmul.f32 %v1373, %v1375
  %v1377 = vadd.f32 %v1373, %v1376
  %vm1378 = vweird.f32 %v1337
  %vm1379 = vweird.f32 %v1373
  %vm1380 = vmor %vm1378, %vm1379
  %v1381 = vsel %vm1380, %v1373, %v1377
  %v1382 = vand.u32 2147483647, %v1337
  %vm1383 = vcmp.eq.f32.partialorder %v1382, 8.507059e+37
  %v1384 = vand.u32 %v1337, 2147483648
  %v1385 = vor.u32 1.1754944e-38, %v1384
  %v1386 = vsel %vm1383, %v1385, %v1381
  %v1387 = vmul.f32 1.0, %v1386
  %v1388 = vrcp.pop %v1338
  %v1389 = vmul.f32 %v1338, %v1388
  %v1390 = vsub.f32 1.0, %v1389
  %v1391 = vmul.f32 %v1388, %v1390
  %v1392 = vadd.f32 %v1388, %v1391
  %vm1393 = vweird.f32 %v1338
  %vm1394 = vweird.f32 %v1388
  %vm1395 = vmor %vm1393, %vm1394
  %v1396 = vsel %vm1395, %v1388, %v1392
  %v1397 = vand.u32 2147483647, %v1338
  %vm1398 = vcmp.eq.f32.partialorder %v1397, 8.507059e+37
  %v1399 = vand.u32 %v1338, 2147483648
  %v1400 = vor.u32 1.1754944e-38, %v1399
  %v1401 = vsel %vm1398, %v1400, %v1396
  %v1402 = vmul.f32 1.0, %v1401
  %v1403 = vrcp.pop %v1339
  %v1404 = vmul.f32 %v1339, %v1403
  %v1405 = vsub.f32 1.0, %v1404
  %v1406 = vmul.f32 %v1403, %v1405
  %v1407 = vadd.f32 %v1403, %v1406
  %vm1408 = vweird.f32 %v1339
  %vm1409 = vweird.f32 %v1403
  %vm1410 = vmor %vm1408, %vm1409
  %v1411 = vsel %vm1410, %v1403, %v1407
  %v1412 = vand.u32 2147483647, %v1339
  %vm1413 = vcmp.eq.f32.partialorder %v1412, 8.507059e+37
  %v1414 = vand.u32 %v1339, 2147483648
  %v1415 = vor.u32 1.1754944e-38, %v1414
  %v1416 = vsel %vm1413, %v1415, %v1411
  %v1417 = vmul.f32 1.0, %v1416
  %v1418 = vrcp.pop %v1340
  %v1419 = vmul.f32 %v1340, %v1418
  %v1420 = vsub.f32 1.0, %v1419
  %v1421 = vmul.f32 %v1418, %v1420
  %v1422 = vadd.f32 %v1418, %v1421
  %vm1423 = vweird.f32 %v1340
  %vm1424 = vweird.f32 %v1418
  %vm1425 = vmor %vm1423, %vm1424
  %v1426 = vsel %vm1425, %v1418, %v1422
  %v1427 = vand.u32 2147483647, %v1340
  %vm1428 = vcmp.eq.f32.partialorder %v1427, 8.507059e+37
  %v1429 = vand.u32 %v1340, 2147483648
  %v1430 = vor.u32 1.1754944e-38, %v1429
  %v1431 = vsel %vm1428, %v1430, %v1426
  %v1432 = vmul.f32 1.0, %v1431
  %v1433 = vrcp.pop %v1341
  %v1434 = vmul.f32 %v1341, %v1433
  %v1435 = vsub.f32 1.0, %v1434
  %v1436 = vmul.f32 %v1433, %v1435
  %v1437 = vadd.f32 %v1433, %v1436
  %vm1438 = vweird.f32 %v1341
  %vm1439 = vweird.f32 %v1433
  %vm1440 = vmor %vm1438, %vm1439
  %v1441 = vsel %vm1440, %v1433, %v1437
  %v1442 = vand.u32 2147483647, %v1341
  %vm1443 = vcmp.eq.f32.partialorder %v1442, 8.507059e+37
  %v1444 = vand.u32 %v1341, 2147483648
  %v1445 = vor.u32 1.1754944e-38, %v1444
  %v1446 = vsel %vm1443, %v1445, %v1441
  %v1447 = vmul.f32 1.0, %v1446
  %v1448 = vrcp.pop %v1342
  %v1449 = vmul.f32 %v1342, %v1448
  %v1450 = vsub.f32 1.0, %v1449
  %v1451 = vmul.f32 %v1448, %v1450
  %v1452 = vadd.f32 %v1448, %v1451
  %vm1453 = vweird.f32 %v1342
  %vm1454 = vweird.f32 %v1448
  %vm1455 = vmor %vm1453, %vm1454
  %v1456 = vsel %vm1455, %v1448, %v1452
  %v1457 = vand.u32 2147483647, %v1342
  %vm1458 = vcmp.eq.f32.partialorder %v1457, 8.507059e+37
  %v1459 = vand.u32 %v1342, 2147483648
  %v1460 = vor.u32 1.1754944e-38, %v1459
  %v1461 = vsel %vm1458, %v1460, %v1456
  %v1462 = vmul.f32 1.0, %v1461
  %v1463 = vtanh.pop %v1303
  %v1464 = vtanh.pop %v1304
  %v1465 = vtanh.pop %v1305
  %v1466 = vtanh.pop %v1306
  %v1467 = vtanh.pop %v1307
  %v1468 = vtanh.pop %v1308
  %v1469 = vtanh.pop %v1309
  %v1470 = vtanh.pop %v1310
  %v1479 = vrot.slane %v1185, 7
  %v1480 = vrot.slane %v1186, 7
  %v1481 = vrot.slane %v1187, 7
  %v1482 = vrot.slane %v1188, 7
  %v1483 = vrot.slane %v1189, 7
  %v1484 = vrot.slane %v1190, 7
  %v1485 = vrot.slane %v1191, 7
  %v1486 = vrot.slane %v1192, 7
  %v1495 = vmul.f32 %v1357, %v1479
  %v1496 = vmul.f32 %v1372, %v1480
  %v1497 = vmul.f32 %v1387, %v1481
  %v1498 = vmul.f32 %v1402, %v1482
  %v1499 = vmul.f32 %v1417, %v1483
  %v1500 = vmul.f32 %v1432, %v1484
  %v1501 = vmul.f32 %v1447, %v1485
  %v1502 = vmul.f32 %v1462, %v1486
  %1511 = vrot.lane.b32.xlu0 %v1463, 32
  %v1512 = vpop.permute.xlu0 %1511
  %1513 = vrot.lane.b32.xlu0 %v1464, 32
  %v1514 = vpop.permute.xlu0 %1513
  %1515 = vrot.lane.b32.xlu0 %v1465, 32
  %v1516 = vpop.permute.xlu0 %1515
  %1517 = vrot.lane.b32.xlu0 %v1466, 32
  %v1518 = vpop.permute.xlu0 %1517
  %1519 = vrot.lane.b32.xlu0 %v1467, 32
  %v1520 = vpop.permute.xlu0 %1519
  %1521 = vrot.lane.b32.xlu0 %v1468, 32
  %v1522 = vpop.permute.xlu0 %1521
  %1523 = vrot.lane.b32.xlu0 %v1469, 32
  %v1524 = vpop.permute.xlu0 %1523
  %1525 = vrot.lane.b32.xlu0 %v1470, 32
  %v1526 = vpop.permute.xlu0 %1525
  %v1535 = vmul.f32 %v1357, %v1512
  %v1536 = vmul.f32 %v1372, %v1514
  %v1537 = vmul.f32 %v1387, %v1516
  %v1538 = vmul.f32 %v1402, %v1518
  %v1539 = vmul.f32 %v1417, %v1520
  %v1540 = vmul.f32 %v1432, %v1522
  %v1541 = vmul.f32 %v1447, %v1524
  %v1542 = vmul.f32 %v1462, %v1526
  %1551 = vrot.lane.b32.xlu0 %v1535, 32
  %v1552 = vpop.permute.xlu0 %1551
  %1553 = vrot.lane.b32.xlu0 %v1536, 32
  %v1554 = vpop.permute.xlu0 %1553
  %1555 = vrot.lane.b32.xlu0 %v1537, 32
  %v1556 = vpop.permute.xlu0 %1555
  %1557 = vrot.lane.b32.xlu0 %v1538, 32
  %v1558 = vpop.permute.xlu0 %1557
  %1559 = vrot.lane.b32.xlu0 %v1539, 32
  %v1560 = vpop.permute.xlu0 %1559
  %1561 = vrot.lane.b32.xlu0 %v1540, 32
  %v1562 = vpop.permute.xlu0 %1561
  %1563 = vrot.lane.b32.xlu0 %v1541, 32
  %v1564 = vpop.permute.xlu0 %1563
  %1565 = vrot.lane.b32.xlu0 %v1542, 32
  %v1566 = vpop.permute.xlu0 %1565
  %v1575 = vadd.f32 %v1495, %v1552
  %v1576 = vadd.f32 %v1496, %v1554
  %v1577 = vadd.f32 %v1497, %v1556
  %v1578 = vadd.f32 %v1498, %v1558
  %v1579 = vadd.f32 %v1499, %v1560
  %v1580 = vadd.f32 %v1500, %v1562
  %v1581 = vadd.f32 %v1501, %v1564
  %v1582 = vadd.f32 %v1502, %v1566
  %v1583 = vtanh.pop %v1575
  %v1584 = vtanh.pop %v1576
  %v1585 = vtanh.pop %v1577
  %v1586 = vtanh.pop %v1578
  %v1587 = vtanh.pop %v1579
  %v1588 = vtanh.pop %v1580
  %v1589 = vtanh.pop %v1581
  %v1590 = vtanh.pop %v1582
  %1599 = vrot.lane.b32.xlu0 %v1583, 32
  %v1600 = vpop.permute.xlu0 %1599
  %1601 = vrot.lane.b32.xlu0 %v1584, 32
  %v1602 = vpop.permute.xlu0 %1601
  %1603 = vrot.lane.b32.xlu0 %v1585, 32
  %v1604 = vpop.permute.xlu0 %1603
  %1605 = vrot.lane.b32.xlu0 %v1586, 32
  %v1606 = vpop.permute.xlu0 %1605
  %1607 = vrot.lane.b32.xlu0 %v1587, 32
  %v1608 = vpop.permute.xlu0 %1607
  %1609 = vrot.lane.b32.xlu0 %v1588, 32
  %v1610 = vpop.permute.xlu0 %1609
  %1611 = vrot.lane.b32.xlu0 %v1589, 32
  %v1612 = vpop.permute.xlu0 %1611
  %1613 = vrot.lane.b32.xlu0 %v1590, 32
  %v1614 = vpop.permute.xlu0 %1613
  %v1623 = vmul.f32 %v1357, %v1600
  %v1624 = vmul.f32 %v1372, %v1602
  %v1625 = vmul.f32 %v1387, %v1604
  %v1626 = vmul.f32 %v1402, %v1606
  %v1627 = vmul.f32 %v1417, %v1608
  %v1628 = vmul.f32 %v1432, %v1610
  %v1629 = vmul.f32 %v1447, %v1612
  %v1630 = vmul.f32 %v1462, %v1614
  %v1639 = vrot.slane %v1623, 3
  %v1640 = vrot.slane %v1624, 2
  %v1641 = vsel %vm463, %v1640, %v1639
  %v1642 = vrot.slane %v1625, 1
  %v1643 = vsel %vm466, %v1642, %v1641
  %v1644 = vsel %vm469, %v1626, %v1643
  %v1645 = vrot.slane %v1627, 7
  %v1646 = vsel %vm472, %v1645, %v1644
  %v1647 = vrot.slane %v1628, 6
  %v1648 = vsel %vm475, %v1647, %v1646
  %v1649 = vrot.slane %v1629, 5
  %v1650 = vsel %vm478, %v1649, %v1648
  %v1651 = vrot.slane %v1630, 4
  %v1652 = vsel %vm481, %v1651, %v1650
  %1653 = vrot.lane.b32.xlu0 %v1652, 64
  %v1654 = vpop.permute.xlu0 %1653
  %v1655 = vsel %vm110, %v1654, 0
  %1657 = vmatpush.msra.mxu0 0.0
  %1658 = vmatpush.msra.mxu0 0.0
  %1659 = vmatpush.msra.mxu0 0.0
  %1660 = vmatpush.msra.mxu0 0.0
  %1661 = vmatpush.msra.mxu0 0.0
  %1662 = vmatpush.msra.mxu0 0.0
  %1663 = vmatpush.msra.mxu0 0.0
  %1664 = vmatpush.msra.mxu0 0.0
  %1665 = vmatpush.msra.mxu0 0.0
  %1666 = vmatpush.msra.mxu0 0.0
  %1667 = vmatpush.msra.mxu0 0.0
  %1668 = vmatpush.msra.mxu0 0.0
  %1669 = vmatpush.msra.mxu0 %v109
  %1670 = vmatpush.msra.mxu0 %v108
  %1671 = vmatpush.msra.mxu0 %v107
  %1672 = vmatpush.msra.mxu0 %v106
  %1673 = vmatmul.f32.gmra.mxu0 %v1655
  %v1674 = vpop.f32.mrf.mxu0
  %v1675 = vadd.f32 0.0, %v1674
  %1676 = vdwg.mxu0
  %v1678 = vrot.slane %v1675, 4
  %v1679 = vrot.slane %v1675, 5
  %v1680 = vrot.slane %v1675, 6
  %v1681 = vrot.slane %v1675, 7
  %v1682 = vrot.slane %v1675, 1
  %v1683 = vrot.slane %v1675, 2
  %v1684 = vrot.slane %v1675, 3
  %v1693 = vadd.f32 %v83, %v1678
  %v1694 = vadd.f32 %v86, %v1679
  %v1695 = vadd.f32 %v89, %v1680
  %v1696 = vadd.f32 %v92, %v1681
  %v1697 = vadd.f32 %v95, %v1675
  %v1698 = vadd.f32 %v98, %v1682
  %v1699 = vadd.f32 %v101, %v1683
  %v1700 = vadd.f32 %v104, %v1684
  %v1701 = vxor.u32 %v1693, 2147483648
  %v1702 = vxor.u32 %v1694, 2147483648
  %v1703 = vxor.u32 %v1695, 2147483648
  %v1704 = vxor.u32 %v1696, 2147483648
  %v1705 = vxor.u32 %v1697, 2147483648
  %v1706 = vxor.u32 %v1698, 2147483648
  %v1707 = vxor.u32 %v1699, 2147483648
  %v1708 = vxor.u32 %v1700, 2147483648
  %v1709 = vmul.f32 %v1701, 1.442695
  %v1710 = vpow.pop %v1709
  %v1711 = vmul.f32 %v1702, 1.442695
  %v1712 = vpow.pop %v1711
  %v1713 = vmul.f32 %v1703, 1.442695
  %v1714 = vpow.pop %v1713
  %v1715 = vmul.f32 %v1704, 1.442695
  %v1716 = vpow.pop %v1715
  %v1717 = vmul.f32 %v1705, 1.442695
  %v1718 = vpow.pop %v1717
  %v1719 = vmul.f32 %v1706, 1.442695
  %v1720 = vpow.pop %v1719
  %v1721 = vmul.f32 %v1707, 1.442695
  %v1722 = vpow.pop %v1721
  %v1723 = vmul.f32 %v1708, 1.442695
  %v1724 = vpow.pop %v1723
  %v1725 = vadd.f32 %v1710, 1.0
  %v1726 = vadd.f32 %v1712, 1.0
  %v1727 = vadd.f32 %v1714, 1.0
  %v1728 = vadd.f32 %v1716, 1.0
  %v1729 = vadd.f32 %v1718, 1.0
  %v1730 = vadd.f32 %v1720, 1.0
  %v1731 = vadd.f32 %v1722, 1.0
  %v1732 = vadd.f32 %v1724, 1.0
  %v1733 = vrcp.pop %v1725
  %v1734 = vmul.f32 %v1725, %v1733
  %v1735 = vsub.f32 1.0, %v1734
  %v1736 = vmul.f32 %v1733, %v1735
  %v1737 = vadd.f32 %v1733, %v1736
  %vm1738 = vweird.f32 %v1725
  %vm1739 = vweird.f32 %v1733
  %vm1740 = vmor %vm1738, %vm1739
  %v1741 = vsel %vm1740, %v1733, %v1737
  %v1742 = vand.u32 2147483647, %v1725
  %vm1743 = vcmp.eq.f32.partialorder %v1742, 8.507059e+37
  %v1744 = vand.u32 %v1725, 2147483648
  %v1745 = vor.u32 1.1754944e-38, %v1744
  %v1746 = vsel %vm1743, %v1745, %v1741
  %v1747 = vmul.f32 1.0, %v1746
  %v1748 = vrcp.pop %v1726
  %v1749 = vmul.f32 %v1726, %v1748
  %v1750 = vsub.f32 1.0, %v1749
  %v1751 = vmul.f32 %v1748, %v1750
  %v1752 = vadd.f32 %v1748, %v1751
  %vm1753 = vweird.f32 %v1726
  %vm1754 = vweird.f32 %v1748
  %vm1755 = vmor %vm1753, %vm1754
  %v1756 = vsel %vm1755, %v1748, %v1752
  %v1757 = vand.u32 2147483647, %v1726
  %vm1758 = vcmp.eq.f32.partialorder %v1757, 8.507059e+37
  %v1759 = vand.u32 %v1726, 2147483648
  %v1760 = vor.u32 1.1754944e-38, %v1759
  %v1761 = vsel %vm1758, %v1760, %v1756
  %v1762 = vmul.f32 1.0, %v1761
  %v1763 = vrcp.pop %v1727
  %v1764 = vmul.f32 %v1727, %v1763
  %v1765 = vsub.f32 1.0, %v1764
  %v1766 = vmul.f32 %v1763, %v1765
  %v1767 = vadd.f32 %v1763, %v1766
  %vm1768 = vweird.f32 %v1727
  %vm1769 = vweird.f32 %v1763
  %vm1770 = vmor %vm1768, %vm1769
  %v1771 = vsel %vm1770, %v1763, %v1767
  %v1772 = vand.u32 2147483647, %v1727
  %vm1773 = vcmp.eq.f32.partialorder %v1772, 8.507059e+37
  %v1774 = vand.u32 %v1727, 2147483648
  %v1775 = vor.u32 1.1754944e-38, %v1774
  %v1776 = vsel %vm1773, %v1775, %v1771
  %v1777 = vmul.f32 1.0, %v1776
  %v1778 = vrcp.pop %v1728
  %v1779 = vmul.f32 %v1728, %v1778
  %v1780 = vsub.f32 1.0, %v1779
  %v1781 = vmul.f32 %v1778, %v1780
  %v1782 = vadd.f32 %v1778, %v1781
  %vm1783 = vweird.f32 %v1728
  %vm1784 = vweird.f32 %v1778
  %vm1785 = vmor %vm1783, %vm1784
  %v1786 = vsel %vm1785, %v1778, %v1782
  %v1787 = vand.u32 2147483647, %v1728
  %vm1788 = vcmp.eq.f32.partialorder %v1787, 8.507059e+37
  %v1789 = vand.u32 %v1728, 2147483648
  %v1790 = vor.u32 1.1754944e-38, %v1789
  %v1791 = vsel %vm1788, %v1790, %v1786
  %v1792 = vmul.f32 1.0, %v1791
  %v1793 = vrcp.pop %v1729
  %v1794 = vmul.f32 %v1729, %v1793
  %v1795 = vsub.f32 1.0, %v1794
  %v1796 = vmul.f32 %v1793, %v1795
  %v1797 = vadd.f32 %v1793, %v1796
  %vm1798 = vweird.f32 %v1729
  %vm1799 = vweird.f32 %v1793
  %vm1800 = vmor %vm1798, %vm1799
  %v1801 = vsel %vm1800, %v1793, %v1797
  %v1802 = vand.u32 2147483647, %v1729
  %vm1803 = vcmp.eq.f32.partialorder %v1802, 8.507059e+37
  %v1804 = vand.u32 %v1729, 2147483648
  %v1805 = vor.u32 1.1754944e-38, %v1804
  %v1806 = vsel %vm1803, %v1805, %v1801
  %v1807 = vmul.f32 1.0, %v1806
  %v1808 = vrcp.pop %v1730
  %v1809 = vmul.f32 %v1730, %v1808
  %v1810 = vsub.f32 1.0, %v1809
  %v1811 = vmul.f32 %v1808, %v1810
  %v1812 = vadd.f32 %v1808, %v1811
  %vm1813 = vweird.f32 %v1730
  %vm1814 = vweird.f32 %v1808
  %vm1815 = vmor %vm1813, %vm1814
  %v1816 = vsel %vm1815, %v1808, %v1812
  %v1817 = vand.u32 2147483647, %v1730
  %vm1818 = vcmp.eq.f32.partialorder %v1817, 8.507059e+37
  %v1819 = vand.u32 %v1730, 2147483648
  %v1820 = vor.u32 1.1754944e-38, %v1819
  %v1821 = vsel %vm1818, %v1820, %v1816
  %v1822 = vmul.f32 1.0, %v1821
  %v1823 = vrcp.pop %v1731
  %v1824 = vmul.f32 %v1731, %v1823
  %v1825 = vsub.f32 1.0, %v1824
  %v1826 = vmul.f32 %v1823, %v1825
  %v1827 = vadd.f32 %v1823, %v1826
  %vm1828 = vweird.f32 %v1731
  %vm1829 = vweird.f32 %v1823
  %vm1830 = vmor %vm1828, %vm1829
  %v1831 = vsel %vm1830, %v1823, %v1827
  %v1832 = vand.u32 2147483647, %v1731
  %vm1833 = vcmp.eq.f32.partialorder %v1832, 8.507059e+37
  %v1834 = vand.u32 %v1731, 2147483648
  %v1835 = vor.u32 1.1754944e-38, %v1834
  %v1836 = vsel %vm1833, %v1835, %v1831
  %v1837 = vmul.f32 1.0, %v1836
  %v1838 = vrcp.pop %v1732
  %v1839 = vmul.f32 %v1732, %v1838
  %v1840 = vsub.f32 1.0, %v1839
  %v1841 = vmul.f32 %v1838, %v1840
  %v1842 = vadd.f32 %v1838, %v1841
  %vm1843 = vweird.f32 %v1732
  %vm1844 = vweird.f32 %v1838
  %vm1845 = vmor %vm1843, %vm1844
  %v1846 = vsel %vm1845, %v1838, %v1842
  %v1847 = vand.u32 2147483647, %v1732
  %vm1848 = vcmp.eq.f32.partialorder %v1847, 8.507059e+37
  %v1849 = vand.u32 %v1732, 2147483648
  %v1850 = vor.u32 1.1754944e-38, %v1849
  %v1851 = vsel %vm1848, %v1850, %v1846
  %v1852 = vmul.f32 1.0, %v1851
  %v1853 = vtanh.pop %v1693
  %v1854 = vtanh.pop %v1694
  %v1855 = vtanh.pop %v1695
  %v1856 = vtanh.pop %v1696
  %v1857 = vtanh.pop %v1697
  %v1858 = vtanh.pop %v1698
  %v1859 = vtanh.pop %v1699
  %v1860 = vtanh.pop %v1700
  %v1869 = vrot.slane %v1575, 7
  %v1870 = vrot.slane %v1576, 7
  %v1871 = vrot.slane %v1577, 7
  %v1872 = vrot.slane %v1578, 7
  %v1873 = vrot.slane %v1579, 7
  %v1874 = vrot.slane %v1580, 7
  %v1875 = vrot.slane %v1581, 7
  %v1876 = vrot.slane %v1582, 7
  %v1885 = vmul.f32 %v1747, %v1869
  %v1886 = vmul.f32 %v1762, %v1870
  %v1887 = vmul.f32 %v1777, %v1871
  %v1888 = vmul.f32 %v1792, %v1872
  %v1889 = vmul.f32 %v1807, %v1873
  %v1890 = vmul.f32 %v1822, %v1874
  %v1891 = vmul.f32 %v1837, %v1875
  %v1892 = vmul.f32 %v1852, %v1876
  %1901 = vrot.lane.b32.xlu0 %v1853, 32
  %v1902 = vpop.permute.xlu0 %1901
  %1903 = vrot.lane.b32.xlu0 %v1854, 32
  %v1904 = vpop.permute.xlu0 %1903
  %1905 = vrot.lane.b32.xlu0 %v1855, 32
  %v1906 = vpop.permute.xlu0 %1905
  %1907 = vrot.lane.b32.xlu0 %v1856, 32
  %v1908 = vpop.permute.xlu0 %1907
  %1909 = vrot.lane.b32.xlu0 %v1857, 32
  %v1910 = vpop.permute.xlu0 %1909
  %1911 = vrot.lane.b32.xlu0 %v1858, 32
  %v1912 = vpop.permute.xlu0 %1911
  %1913 = vrot.lane.b32.xlu0 %v1859, 32
  %v1914 = vpop.permute.xlu0 %1913
  %1915 = vrot.lane.b32.xlu0 %v1860, 32
  %v1916 = vpop.permute.xlu0 %1915
  %v1925 = vmul.f32 %v1747, %v1902
  %v1926 = vmul.f32 %v1762, %v1904
  %v1927 = vmul.f32 %v1777, %v1906
  %v1928 = vmul.f32 %v1792, %v1908
  %v1929 = vmul.f32 %v1807, %v1910
  %v1930 = vmul.f32 %v1822, %v1912
  %v1931 = vmul.f32 %v1837, %v1914
  %v1932 = vmul.f32 %v1852, %v1916
  %1941 = vrot.lane.b32.xlu0 %v1925, 32
  %v1942 = vpop.permute.xlu0 %1941
  %1943 = vrot.lane.b32.xlu0 %v1926, 32
  %v1944 = vpop.permute.xlu0 %1943
  %1945 = vrot.lane.b32.xlu0 %v1927, 32
  %v1946 = vpop.permute.xlu0 %1945
  %1947 = vrot.lane.b32.xlu0 %v1928, 32
  %v1948 = vpop.permute.xlu0 %1947
  %1949 = vrot.lane.b32.xlu0 %v1929, 32
  %v1950 = vpop.permute.xlu0 %1949
  %1951 = vrot.lane.b32.xlu0 %v1930, 32
  %v1952 = vpop.permute.xlu0 %1951
  %1953 = vrot.lane.b32.xlu0 %v1931, 32
  %v1954 = vpop.permute.xlu0 %1953
  %1955 = vrot.lane.b32.xlu0 %v1932, 32
  %v1956 = vpop.permute.xlu0 %1955
  %v1965 = vadd.f32 %v1885, %v1942
  %v1966 = vadd.f32 %v1886, %v1944
  %v1967 = vadd.f32 %v1887, %v1946
  %v1968 = vadd.f32 %v1888, %v1948
  %v1969 = vadd.f32 %v1889, %v1950
  %v1970 = vadd.f32 %v1890, %v1952
  %v1971 = vadd.f32 %v1891, %v1954
  %v1972 = vadd.f32 %v1892, %v1956
  %v1973 = vtanh.pop %v1965
  %v1974 = vtanh.pop %v1966
  %v1975 = vtanh.pop %v1967
  %v1976 = vtanh.pop %v1968
  %v1977 = vtanh.pop %v1969
  %v1978 = vtanh.pop %v1970
  %v1979 = vtanh.pop %v1971
  %v1980 = vtanh.pop %v1972
  %1989 = vrot.lane.b32.xlu0 %v1973, 32
  %v1990 = vpop.permute.xlu0 %1989
  %1991 = vrot.lane.b32.xlu0 %v1974, 32
  %v1992 = vpop.permute.xlu0 %1991
  %1993 = vrot.lane.b32.xlu0 %v1975, 32
  %v1994 = vpop.permute.xlu0 %1993
  %1995 = vrot.lane.b32.xlu0 %v1976, 32
  %v1996 = vpop.permute.xlu0 %1995
  %1997 = vrot.lane.b32.xlu0 %v1977, 32
  %v1998 = vpop.permute.xlu0 %1997
  %1999 = vrot.lane.b32.xlu0 %v1978, 32
  %v2000 = vpop.permute.xlu0 %1999
  %2001 = vrot.lane.b32.xlu0 %v1979, 32
  %v2002 = vpop.permute.xlu0 %2001
  %2003 = vrot.lane.b32.xlu0 %v1980, 32
  %v2004 = vpop.permute.xlu0 %2003
  %v2013 = vmul.f32 %v1747, %v1990
  %v2014 = vmul.f32 %v1762, %v1992
  %v2015 = vmul.f32 %v1777, %v1994
  %v2016 = vmul.f32 %v1792, %v1996
  %v2017 = vmul.f32 %v1807, %v1998
  %v2018 = vmul.f32 %v1822, %v2000
  %v2019 = vmul.f32 %v1837, %v2002
  %v2020 = vmul.f32 %v1852, %v2004
  %v2029 = vrot.slane %v2013, 4
  %v2030 = vrot.slane %v2014, 3
  %v2031 = vsel %vm463, %v2030, %v2029
  %v2032 = vrot.slane %v2015, 2
  %v2033 = vsel %vm466, %v2032, %v2031
  %v2034 = vrot.slane %v2016, 1
  %v2035 = vsel %vm469, %v2034, %v2033
  %v2036 = vsel %vm472, %v2017, %v2035
  %v2037 = vrot.slane %v2018, 7
  %v2038 = vsel %vm475, %v2037, %v2036
  %v2039 = vrot.slane %v2019, 6
  %v2040 = vsel %vm478, %v2039, %v2038
  %v2041 = vrot.slane %v2020, 5
  %v2042 = vsel %vm481, %v2041, %v2040
  %2043 = vrot.lane.b32.xlu0 %v2042, 64
  %v2044 = vpop.permute.xlu0 %2043
  %v2045 = vsel %vm110, %v2044, 0
  %2047 = vmatpush.msra.mxu0 0.0
  %2048 = vmatpush.msra.mxu0 0.0
  %2049 = vmatpush.msra.mxu0 0.0
  %2050 = vmatpush.msra.mxu0 0.0
  %2051 = vmatpush.msra.mxu0 0.0
  %2052 = vmatpush.msra.mxu0 0.0
  %2053 = vmatpush.msra.mxu0 0.0
  %2054 = vmatpush.msra.mxu0 0.0
  %2055 = vmatpush.msra.mxu0 0.0
  %2056 = vmatpush.msra.mxu0 0.0
  %2057 = vmatpush.msra.mxu0 0.0
  %2058 = vmatpush.msra.mxu0 0.0
  %2059 = vmatpush.msra.mxu0 %v109
  %2060 = vmatpush.msra.mxu0 %v108
  %2061 = vmatpush.msra.mxu0 %v107
  %2062 = vmatpush.msra.mxu0 %v106
  %2063 = vmatmul.f32.gmra.mxu0 %v2045
  %v2064 = vpop.f32.mrf.mxu0
  %v2065 = vadd.f32 0.0, %v2064
  %2066 = vdwg.mxu0
  %v2068 = vrot.slane %v2065, 3
  %v2069 = vrot.slane %v2065, 4
  %v2070 = vrot.slane %v2065, 5
  %v2071 = vrot.slane %v2065, 6
  %v2072 = vrot.slane %v2065, 7
  %v2073 = vrot.slane %v2065, 1
  %v2074 = vrot.slane %v2065, 2
  %v2083 = vadd.f32 %v83, %v2068
  %v2084 = vadd.f32 %v86, %v2069
  %v2085 = vadd.f32 %v89, %v2070
  %v2086 = vadd.f32 %v92, %v2071
  %v2087 = vadd.f32 %v95, %v2072
  %v2088 = vadd.f32 %v98, %v2065
  %v2089 = vadd.f32 %v101, %v2073
  %v2090 = vadd.f32 %v104, %v2074
  %v2091 = vxor.u32 %v2083, 2147483648
  %v2092 = vxor.u32 %v2084, 2147483648
  %v2093 = vxor.u32 %v2085, 2147483648
  %v2094 = vxor.u32 %v2086, 2147483648
  %v2095 = vxor.u32 %v2087, 2147483648
  %v2096 = vxor.u32 %v2088, 2147483648
  %v2097 = vxor.u32 %v2089, 2147483648
  %v2098 = vxor.u32 %v2090, 2147483648
  %v2099 = vmul.f32 %v2091, 1.442695
  %v2100 = vpow.pop %v2099
  %v2101 = vmul.f32 %v2092, 1.442695
  %v2102 = vpow.pop %v2101
  %v2103 = vmul.f32 %v2093, 1.442695
  %v2104 = vpow.pop %v2103
  %v2105 = vmul.f32 %v2094, 1.442695
  %v2106 = vpow.pop %v2105
  %v2107 = vmul.f32 %v2095, 1.442695
  %v2108 = vpow.pop %v2107
  %v2109 = vmul.f32 %v2096, 1.442695
  %v2110 = vpow.pop %v2109
  %v2111 = vmul.f32 %v2097, 1.442695
  %v2112 = vpow.pop %v2111
  %v2113 = vmul.f32 %v2098, 1.442695
  %v2114 = vpow.pop %v2113
  %v2115 = vadd.f32 %v2100, 1.0
  %v2116 = vadd.f32 %v2102, 1.0
  %v2117 = vadd.f32 %v2104, 1.0
  %v2118 = vadd.f32 %v2106, 1.0
  %v2119 = vadd.f32 %v2108, 1.0
  %v2120 = vadd.f32 %v2110, 1.0
  %v2121 = vadd.f32 %v2112, 1.0
  %v2122 = vadd.f32 %v2114, 1.0
  %v2123 = vrcp.pop %v2115
  %v2124 = vmul.f32 %v2115, %v2123
  %v2125 = vsub.f32 1.0, %v2124
  %v2126 = vmul.f32 %v2123, %v2125
  %v2127 = vadd.f32 %v2123, %v2126
  %vm2128 = vweird.f32 %v2115
  %vm2129 = vweird.f32 %v2123
  %vm2130 = vmor %vm2128, %vm2129
  %v2131 = vsel %vm2130, %v2123, %v2127
  %v2132 = vand.u32 2147483647, %v2115
  %vm2133 = vcmp.eq.f32.partialorder %v2132, 8.507059e+37
  %v2134 = vand.u32 %v2115, 2147483648
  %v2135 = vor.u32 1.1754944e-38, %v2134
  %v2136 = vsel %vm2133, %v2135, %v2131
  %v2137 = vmul.f32 1.0, %v2136
  %v2138 = vrcp.pop %v2116
  %v2139 = vmul.f32 %v2116, %v2138
  %v2140 = vsub.f32 1.0, %v2139
  %v2141 = vmul.f32 %v2138, %v2140
  %v2142 = vadd.f32 %v2138, %v2141
  %vm2143 = vweird.f32 %v2116
  %vm2144 = vweird.f32 %v2138
  %vm2145 = vmor %vm2143, %vm2144
  %v2146 = vsel %vm2145, %v2138, %v2142
  %v2147 = vand.u32 2147483647, %v2116
  %vm2148 = vcmp.eq.f32.partialorder %v2147, 8.507059e+37
  %v2149 = vand.u32 %v2116, 2147483648
  %v2150 = vor.u32 1.1754944e-38, %v2149
  %v2151 = vsel %vm2148, %v2150, %v2146
  %v2152 = vmul.f32 1.0, %v2151
  %v2153 = vrcp.pop %v2117
  %v2154 = vmul.f32 %v2117, %v2153
  %v2155 = vsub.f32 1.0, %v2154
  %v2156 = vmul.f32 %v2153, %v2155
  %v2157 = vadd.f32 %v2153, %v2156
  %vm2158 = vweird.f32 %v2117
  %vm2159 = vweird.f32 %v2153
  %vm2160 = vmor %vm2158, %vm2159
  %v2161 = vsel %vm2160, %v2153, %v2157
  %v2162 = vand.u32 2147483647, %v2117
  %vm2163 = vcmp.eq.f32.partialorder %v2162, 8.507059e+37
  %v2164 = vand.u32 %v2117, 2147483648
  %v2165 = vor.u32 1.1754944e-38, %v2164
  %v2166 = vsel %vm2163, %v2165, %v2161
  %v2167 = vmul.f32 1.0, %v2166
  %v2168 = vrcp.pop %v2118
  %v2169 = vmul.f32 %v2118, %v2168
  %v2170 = vsub.f32 1.0, %v2169
  %v2171 = vmul.f32 %v2168, %v2170
  %v2172 = vadd.f32 %v2168, %v2171
  %vm2173 = vweird.f32 %v2118
  %vm2174 = vweird.f32 %v2168
  %vm2175 = vmor %vm2173, %vm2174
  %v2176 = vsel %vm2175, %v2168, %v2172
  %v2177 = vand.u32 2147483647, %v2118
  %vm2178 = vcmp.eq.f32.partialorder %v2177, 8.507059e+37
  %v2179 = vand.u32 %v2118, 2147483648
  %v2180 = vor.u32 1.1754944e-38, %v2179
  %v2181 = vsel %vm2178, %v2180, %v2176
  %v2182 = vmul.f32 1.0, %v2181
  %v2183 = vrcp.pop %v2119
  %v2184 = vmul.f32 %v2119, %v2183
  %v2185 = vsub.f32 1.0, %v2184
  %v2186 = vmul.f32 %v2183, %v2185
  %v2187 = vadd.f32 %v2183, %v2186
  %vm2188 = vweird.f32 %v2119
  %vm2189 = vweird.f32 %v2183
  %vm2190 = vmor %vm2188, %vm2189
  %v2191 = vsel %vm2190, %v2183, %v2187
  %v2192 = vand.u32 2147483647, %v2119
  %vm2193 = vcmp.eq.f32.partialorder %v2192, 8.507059e+37
  %v2194 = vand.u32 %v2119, 2147483648
  %v2195 = vor.u32 1.1754944e-38, %v2194
  %v2196 = vsel %vm2193, %v2195, %v2191
  %v2197 = vmul.f32 1.0, %v2196
  %v2198 = vrcp.pop %v2120
  %v2199 = vmul.f32 %v2120, %v2198
  %v2200 = vsub.f32 1.0, %v2199
  %v2201 = vmul.f32 %v2198, %v2200
  %v2202 = vadd.f32 %v2198, %v2201
  %vm2203 = vweird.f32 %v2120
  %vm2204 = vweird.f32 %v2198
  %vm2205 = vmor %vm2203, %vm2204
  %v2206 = vsel %vm2205, %v2198, %v2202
  %v2207 = vand.u32 2147483647, %v2120
  %vm2208 = vcmp.eq.f32.partialorder %v2207, 8.507059e+37
  %v2209 = vand.u32 %v2120, 2147483648
  %v2210 = vor.u32 1.1754944e-38, %v2209
  %v2211 = vsel %vm2208, %v2210, %v2206
  %v2212 = vmul.f32 1.0, %v2211
  %v2213 = vrcp.pop %v2121
  %v2214 = vmul.f32 %v2121, %v2213
  %v2215 = vsub.f32 1.0, %v2214
  %v2216 = vmul.f32 %v2213, %v2215
  %v2217 = vadd.f32 %v2213, %v2216
  %vm2218 = vweird.f32 %v2121
  %vm2219 = vweird.f32 %v2213
  %vm2220 = vmor %vm2218, %vm2219
  %v2221 = vsel %vm2220, %v2213, %v2217
  %v2222 = vand.u32 2147483647, %v2121
  %vm2223 = vcmp.eq.f32.partialorder %v2222, 8.507059e+37
  %v2224 = vand.u32 %v2121, 2147483648
  %v2225 = vor.u32 1.1754944e-38, %v2224
  %v2226 = vsel %vm2223, %v2225, %v2221
  %v2227 = vmul.f32 1.0, %v2226
  %v2228 = vrcp.pop %v2122
  %v2229 = vmul.f32 %v2122, %v2228
  %v2230 = vsub.f32 1.0, %v2229
  %v2231 = vmul.f32 %v2228, %v2230
  %v2232 = vadd.f32 %v2228, %v2231
  %vm2233 = vweird.f32 %v2122
  %vm2234 = vweird.f32 %v2228
  %vm2235 = vmor %vm2233, %vm2234
  %v2236 = vsel %vm2235, %v2228, %v2232
  %v2237 = vand.u32 2147483647, %v2122
  %vm2238 = vcmp.eq.f32.partialorder %v2237, 8.507059e+37
  %v2239 = vand.u32 %v2122, 2147483648
  %v2240 = vor.u32 1.1754944e-38, %v2239
  %v2241 = vsel %vm2238, %v2240, %v2236
  %v2242 = vmul.f32 1.0, %v2241
  %v2243 = vtanh.pop %v2083
  %v2244 = vtanh.pop %v2084
  %v2245 = vtanh.pop %v2085
  %v2246 = vtanh.pop %v2086
  %v2247 = vtanh.pop %v2087
  %v2248 = vtanh.pop %v2088
  %v2249 = vtanh.pop %v2089
  %v2250 = vtanh.pop %v2090
  %v2259 = vrot.slane %v1965, 7
  %v2260 = vrot.slane %v1966, 7
  %v2261 = vrot.slane %v1967, 7
  %v2262 = vrot.slane %v1968, 7
  %v2263 = vrot.slane %v1969, 7
  %v2264 = vrot.slane %v1970, 7
  %v2265 = vrot.slane %v1971, 7
  %v2266 = vrot.slane %v1972, 7
  %v2275 = vmul.f32 %v2137, %v2259
  %v2276 = vmul.f32 %v2152, %v2260
  %v2277 = vmul.f32 %v2167, %v2261
  %v2278 = vmul.f32 %v2182, %v2262
  %v2279 = vmul.f32 %v2197, %v2263
  %v2280 = vmul.f32 %v2212, %v2264
  %v2281 = vmul.f32 %v2227, %v2265
  %v2282 = vmul.f32 %v2242, %v2266
  %2291 = vrot.lane.b32.xlu0 %v2243, 32
  %v2292 = vpop.permute.xlu0 %2291
  %2293 = vrot.lane.b32.xlu0 %v2244, 32
  %v2294 = vpop.permute.xlu0 %2293
  %2295 = vrot.lane.b32.xlu0 %v2245, 32
  %v2296 = vpop.permute.xlu0 %2295
  %2297 = vrot.lane.b32.xlu0 %v2246, 32
  %v2298 = vpop.permute.xlu0 %2297
  %2299 = vrot.lane.b32.xlu0 %v2247, 32
  %v2300 = vpop.permute.xlu0 %2299
  %2301 = vrot.lane.b32.xlu0 %v2248, 32
  %v2302 = vpop.permute.xlu0 %2301
  %2303 = vrot.lane.b32.xlu0 %v2249, 32
  %v2304 = vpop.permute.xlu0 %2303
  %2305 = vrot.lane.b32.xlu0 %v2250, 32
  %v2306 = vpop.permute.xlu0 %2305
  %v2315 = vmul.f32 %v2137, %v2292
  %v2316 = vmul.f32 %v2152, %v2294
  %v2317 = vmul.f32 %v2167, %v2296
  %v2318 = vmul.f32 %v2182, %v2298
  %v2319 = vmul.f32 %v2197, %v2300
  %v2320 = vmul.f32 %v2212, %v2302
  %v2321 = vmul.f32 %v2227, %v2304
  %v2322 = vmul.f32 %v2242, %v2306
  %2331 = vrot.lane.b32.xlu0 %v2315, 32
  %v2332 = vpop.permute.xlu0 %2331
  %2333 = vrot.lane.b32.xlu0 %v2316, 32
  %v2334 = vpop.permute.xlu0 %2333
  %2335 = vrot.lane.b32.xlu0 %v2317, 32
  %v2336 = vpop.permute.xlu0 %2335
  %2337 = vrot.lane.b32.xlu0 %v2318, 32
  %v2338 = vpop.permute.xlu0 %2337
  %2339 = vrot.lane.b32.xlu0 %v2319, 32
  %v2340 = vpop.permute.xlu0 %2339
  %2341 = vrot.lane.b32.xlu0 %v2320, 32
  %v2342 = vpop.permute.xlu0 %2341
  %2343 = vrot.lane.b32.xlu0 %v2321, 32
  %v2344 = vpop.permute.xlu0 %2343
  %2345 = vrot.lane.b32.xlu0 %v2322, 32
  %v2346 = vpop.permute.xlu0 %2345
  %v2355 = vadd.f32 %v2275, %v2332
  %v2356 = vadd.f32 %v2276, %v2334
  %v2357 = vadd.f32 %v2277, %v2336
  %v2358 = vadd.f32 %v2278, %v2338
  %v2359 = vadd.f32 %v2279, %v2340
  %v2360 = vadd.f32 %v2280, %v2342
  %v2361 = vadd.f32 %v2281, %v2344
  %v2362 = vadd.f32 %v2282, %v2346
  %v2363 = vtanh.pop %v2355
  %v2364 = vtanh.pop %v2356
  %v2365 = vtanh.pop %v2357
  %v2366 = vtanh.pop %v2358
  %v2367 = vtanh.pop %v2359
  %v2368 = vtanh.pop %v2360
  %v2369 = vtanh.pop %v2361
  %v2370 = vtanh.pop %v2362
  %2379 = vrot.lane.b32.xlu0 %v2363, 32
  %v2380 = vpop.permute.xlu0 %2379
  %2381 = vrot.lane.b32.xlu0 %v2364, 32
  %v2382 = vpop.permute.xlu0 %2381
  %2383 = vrot.lane.b32.xlu0 %v2365, 32
  %v2384 = vpop.permute.xlu0 %2383
  %2385 = vrot.lane.b32.xlu0 %v2366, 32
  %v2386 = vpop.permute.xlu0 %2385
  %2387 = vrot.lane.b32.xlu0 %v2367, 32
  %v2388 = vpop.permute.xlu0 %2387
  %2389 = vrot.lane.b32.xlu0 %v2368, 32
  %v2390 = vpop.permute.xlu0 %2389
  %2391 = vrot.lane.b32.xlu0 %v2369, 32
  %v2392 = vpop.permute.xlu0 %2391
  %2393 = vrot.lane.b32.xlu0 %v2370, 32
  %v2394 = vpop.permute.xlu0 %2393
  %v2403 = vmul.f32 %v2137, %v2380
  %v2404 = vmul.f32 %v2152, %v2382
  %v2405 = vmul.f32 %v2167, %v2384
  %v2406 = vmul.f32 %v2182, %v2386
  %v2407 = vmul.f32 %v2197, %v2388
  %v2408 = vmul.f32 %v2212, %v2390
  %v2409 = vmul.f32 %v2227, %v2392
  %v2410 = vmul.f32 %v2242, %v2394
  %v2419 = vrot.slane %v2403, 5
  %v2420 = vrot.slane %v2404, 4
  %v2421 = vsel %vm463, %v2420, %v2419
  %v2422 = vrot.slane %v2405, 3
  %v2423 = vsel %vm466, %v2422, %v2421
  %v2424 = vrot.slane %v2406, 2
  %v2425 = vsel %vm469, %v2424, %v2423
  %v2426 = vrot.slane %v2407, 1
  %v2427 = vsel %vm472, %v2426, %v2425
  %v2428 = vsel %vm475, %v2408, %v2427
  %v2429 = vrot.slane %v2409, 7
  %v2430 = vsel %vm478, %v2429, %v2428
  %v2431 = vrot.slane %v2410, 6
  %v2432 = vsel %vm481, %v2431, %v2430
  %2433 = vrot.lane.b32.xlu0 %v2432, 64
  %v2434 = vpop.permute.xlu0 %2433
  %v2435 = vsel %vm110, %v2434, 0
  %2437 = vmatpush.msra.mxu0 0.0
  %2438 = vmatpush.msra.mxu0 0.0
  %2439 = vmatpush.msra.mxu0 0.0
  %2440 = vmatpush.msra.mxu0 0.0
  %2441 = vmatpush.msra.mxu0 0.0
  %2442 = vmatpush.msra.mxu0 0.0
  %2443 = vmatpush.msra.mxu0 0.0
  %2444 = vmatpush.msra.mxu0 0.0
  %2445 = vmatpush.msra.mxu0 0.0
  %2446 = vmatpush.msra.mxu0 0.0
  %2447 = vmatpush.msra.mxu0 0.0
  %2448 = vmatpush.msra.mxu0 0.0
  %2449 = vmatpush.msra.mxu0 %v109
  %2450 = vmatpush.msra.mxu0 %v108
  %2451 = vmatpush.msra.mxu0 %v107
  %2452 = vmatpush.msra.mxu0 %v106
  %2453 = vmatmul.f32.gmra.mxu0 %v2435
  %v2454 = vpop.f32.mrf.mxu0
  %v2455 = vadd.f32 0.0, %v2454
  %2456 = vdwg.mxu0
  %v2458 = vrot.slane %v2455, 2
  %v2459 = vrot.slane %v2455, 3
  %v2460 = vrot.slane %v2455, 4
  %v2461 = vrot.slane %v2455, 5
  %v2462 = vrot.slane %v2455, 6
  %v2463 = vrot.slane %v2455, 7
  %v2464 = vrot.slane %v2455, 1
  %v2473 = vadd.f32 %v83, %v2458
  %v2474 = vadd.f32 %v86, %v2459
  %v2475 = vadd.f32 %v89, %v2460
  %v2476 = vadd.f32 %v92, %v2461
  %v2477 = vadd.f32 %v95, %v2462
  %v2478 = vadd.f32 %v98, %v2463
  %v2479 = vadd.f32 %v101, %v2455
  %v2480 = vadd.f32 %v104, %v2464
  %v2481 = vxor.u32 %v2473, 2147483648
  %v2482 = vxor.u32 %v2474, 2147483648
  %v2483 = vxor.u32 %v2475, 2147483648
  %v2484 = vxor.u32 %v2476, 2147483648
  %v2485 = vxor.u32 %v2477, 2147483648
  %v2486 = vxor.u32 %v2478, 2147483648
  %v2487 = vxor.u32 %v2479, 2147483648
  %v2488 = vxor.u32 %v2480, 2147483648
  %v2489 = vmul.f32 %v2481, 1.442695
  %v2490 = vpow.pop %v2489
  %v2491 = vmul.f32 %v2482, 1.442695
  %v2492 = vpow.pop %v2491
  %v2493 = vmul.f32 %v2483, 1.442695
  %v2494 = vpow.pop %v2493
  %v2495 = vmul.f32 %v2484, 1.442695
  %v2496 = vpow.pop %v2495
  %v2497 = vmul.f32 %v2485, 1.442695
  %v2498 = vpow.pop %v2497
  %v2499 = vmul.f32 %v2486, 1.442695
  %v2500 = vpow.pop %v2499
  %v2501 = vmul.f32 %v2487, 1.442695
  %v2502 = vpow.pop %v2501
  %v2503 = vmul.f32 %v2488, 1.442695
  %v2504 = vpow.pop %v2503
  %v2505 = vadd.f32 %v2490, 1.0
  %v2506 = vadd.f32 %v2492, 1.0
  %v2507 = vadd.f32 %v2494, 1.0
  %v2508 = vadd.f32 %v2496, 1.0
  %v2509 = vadd.f32 %v2498, 1.0
  %v2510 = vadd.f32 %v2500, 1.0
  %v2511 = vadd.f32 %v2502, 1.0
  %v2512 = vadd.f32 %v2504, 1.0
  %v2513 = vrcp.pop %v2505
  %v2514 = vmul.f32 %v2505, %v2513
  %v2515 = vsub.f32 1.0, %v2514
  %v2516 = vmul.f32 %v2513, %v2515
  %v2517 = vadd.f32 %v2513, %v2516
  %vm2518 = vweird.f32 %v2505
  %vm2519 = vweird.f32 %v2513
  %vm2520 = vmor %vm2518, %vm2519
  %v2521 = vsel %vm2520, %v2513, %v2517
  %v2522 = vand.u32 2147483647, %v2505
  %vm2523 = vcmp.eq.f32.partialorder %v2522, 8.507059e+37
  %v2524 = vand.u32 %v2505, 2147483648
  %v2525 = vor.u32 1.1754944e-38, %v2524
  %v2526 = vsel %vm2523, %v2525, %v2521
  %v2527 = vmul.f32 1.0, %v2526
  %v2528 = vrcp.pop %v2506
  %v2529 = vmul.f32 %v2506, %v2528
  %v2530 = vsub.f32 1.0, %v2529
  %v2531 = vmul.f32 %v2528, %v2530
  %v2532 = vadd.f32 %v2528, %v2531
  %vm2533 = vweird.f32 %v2506
  %vm2534 = vweird.f32 %v2528
  %vm2535 = vmor %vm2533, %vm2534
  %v2536 = vsel %vm2535, %v2528, %v2532
  %v2537 = vand.u32 2147483647, %v2506
  %vm2538 = vcmp.eq.f32.partialorder %v2537, 8.507059e+37
  %v2539 = vand.u32 %v2506, 2147483648
  %v2540 = vor.u32 1.1754944e-38, %v2539
  %v2541 = vsel %vm2538, %v2540, %v2536
  %v2542 = vmul.f32 1.0, %v2541
  %v2543 = vrcp.pop %v2507
  %v2544 = vmul.f32 %v2507, %v2543
  %v2545 = vsub.f32 1.0, %v2544
  %v2546 = vmul.f32 %v2543, %v2545
  %v2547 = vadd.f32 %v2543, %v2546
  %vm2548 = vweird.f32 %v2507
  %vm2549 = vweird.f32 %v2543
  %vm2550 = vmor %vm2548, %vm2549
  %v2551 = vsel %vm2550, %v2543, %v2547
  %v2552 = vand.u32 2147483647, %v2507
  %vm2553 = vcmp.eq.f32.partialorder %v2552, 8.507059e+37
  %v2554 = vand.u32 %v2507, 2147483648
  %v2555 = vor.u32 1.1754944e-38, %v2554
  %v2556 = vsel %vm2553, %v2555, %v2551
  %v2557 = vmul.f32 1.0, %v2556
  %v2558 = vrcp.pop %v2508
  %v2559 = vmul.f32 %v2508, %v2558
  %v2560 = vsub.f32 1.0, %v2559
  %v2561 = vmul.f32 %v2558, %v2560
  %v2562 = vadd.f32 %v2558, %v2561
  %vm2563 = vweird.f32 %v2508
  %vm2564 = vweird.f32 %v2558
  %vm2565 = vmor %vm2563, %vm2564
  %v2566 = vsel %vm2565, %v2558, %v2562
  %v2567 = vand.u32 2147483647, %v2508
  %vm2568 = vcmp.eq.f32.partialorder %v2567, 8.507059e+37
  %v2569 = vand.u32 %v2508, 2147483648
  %v2570 = vor.u32 1.1754944e-38, %v2569
  %v2571 = vsel %vm2568, %v2570, %v2566
  %v2572 = vmul.f32 1.0, %v2571
  %v2573 = vrcp.pop %v2509
  %v2574 = vmul.f32 %v2509, %v2573
  %v2575 = vsub.f32 1.0, %v2574
  %v2576 = vmul.f32 %v2573, %v2575
  %v2577 = vadd.f32 %v2573, %v2576
  %vm2578 = vweird.f32 %v2509
  %vm2579 = vweird.f32 %v2573
  %vm2580 = vmor %vm2578, %vm2579
  %v2581 = vsel %vm2580, %v2573, %v2577
  %v2582 = vand.u32 2147483647, %v2509
  %vm2583 = vcmp.eq.f32.partialorder %v2582, 8.507059e+37
  %v2584 = vand.u32 %v2509, 2147483648
  %v2585 = vor.u32 1.1754944e-38, %v2584
  %v2586 = vsel %vm2583, %v2585, %v2581
  %v2587 = vmul.f32 1.0, %v2586
  %v2588 = vrcp.pop %v2510
  %v2589 = vmul.f32 %v2510, %v2588
  %v2590 = vsub.f32 1.0, %v2589
  %v2591 = vmul.f32 %v2588, %v2590
  %v2592 = vadd.f32 %v2588, %v2591
  %vm2593 = vweird.f32 %v2510
  %vm2594 = vweird.f32 %v2588
  %vm2595 = vmor %vm2593, %vm2594
  %v2596 = vsel %vm2595, %v2588, %v2592
  %v2597 = vand.u32 2147483647, %v2510
  %vm2598 = vcmp.eq.f32.partialorder %v2597, 8.507059e+37
  %v2599 = vand.u32 %v2510, 2147483648
  %v2600 = vor.u32 1.1754944e-38, %v2599
  %v2601 = vsel %vm2598, %v2600, %v2596
  %v2602 = vmul.f32 1.0, %v2601
  %v2603 = vrcp.pop %v2511
  %v2604 = vmul.f32 %v2511, %v2603
  %v2605 = vsub.f32 1.0, %v2604
  %v2606 = vmul.f32 %v2603, %v2605
  %v2607 = vadd.f32 %v2603, %v2606
  %vm2608 = vweird.f32 %v2511
  %vm2609 = vweird.f32 %v2603
  %vm2610 = vmor %vm2608, %vm2609
  %v2611 = vsel %vm2610, %v2603, %v2607
  %v2612 = vand.u32 2147483647, %v2511
  %vm2613 = vcmp.eq.f32.partialorder %v2612, 8.507059e+37
  %v2614 = vand.u32 %v2511, 2147483648
  %v2615 = vor.u32 1.1754944e-38, %v2614
  %v2616 = vsel %vm2613, %v2615, %v2611
  %v2617 = vmul.f32 1.0, %v2616
  %v2618 = vrcp.pop %v2512
  %v2619 = vmul.f32 %v2512, %v2618
  %v2620 = vsub.f32 1.0, %v2619
  %v2621 = vmul.f32 %v2618, %v2620
  %v2622 = vadd.f32 %v2618, %v2621
  %vm2623 = vweird.f32 %v2512
  %vm2624 = vweird.f32 %v2618
  %vm2625 = vmor %vm2623, %vm2624
  %v2626 = vsel %vm2625, %v2618, %v2622
  %v2627 = vand.u32 2147483647, %v2512
  %vm2628 = vcmp.eq.f32.partialorder %v2627, 8.507059e+37
  %v2629 = vand.u32 %v2512, 2147483648
  %v2630 = vor.u32 1.1754944e-38, %v2629
  %v2631 = vsel %vm2628, %v2630, %v2626
  %v2632 = vmul.f32 1.0, %v2631
  %v2633 = vtanh.pop %v2473
  %v2634 = vtanh.pop %v2474
  %v2635 = vtanh.pop %v2475
  %v2636 = vtanh.pop %v2476
  %v2637 = vtanh.pop %v2477
  %v2638 = vtanh.pop %v2478
  %v2639 = vtanh.pop %v2479
  %v2640 = vtanh.pop %v2480
  %v2649 = vrot.slane %v2355, 7
  %v2650 = vrot.slane %v2356, 7
  %v2651 = vrot.slane %v2357, 7
  %v2652 = vrot.slane %v2358, 7
  %v2653 = vrot.slane %v2359, 7
  %v2654 = vrot.slane %v2360, 7
  %v2655 = vrot.slane %v2361, 7
  %v2656 = vrot.slane %v2362, 7
  %v2665 = vmul.f32 %v2527, %v2649
  %v2666 = vmul.f32 %v2542, %v2650
  %v2667 = vmul.f32 %v2557, %v2651
  %v2668 = vmul.f32 %v2572, %v2652
  %v2669 = vmul.f32 %v2587, %v2653
  %v2670 = vmul.f32 %v2602, %v2654
  %v2671 = vmul.f32 %v2617, %v2655
  %v2672 = vmul.f32 %v2632, %v2656
  %2681 = vrot.lane.b32.xlu0 %v2633, 32
  %v2682 = vpop.permute.xlu0 %2681
  %2683 = vrot.lane.b32.xlu0 %v2634, 32
  %v2684 = vpop.permute.xlu0 %2683
  %2685 = vrot.lane.b32.xlu0 %v2635, 32
  %v2686 = vpop.permute.xlu0 %2685
  %2687 = vrot.lane.b32.xlu0 %v2636, 32
  %v2688 = vpop.permute.xlu0 %2687
  %2689 = vrot.lane.b32.xlu0 %v2637, 32
  %v2690 = vpop.permute.xlu0 %2689
  %2691 = vrot.lane.b32.xlu0 %v2638, 32
  %v2692 = vpop.permute.xlu0 %2691
  %2693 = vrot.lane.b32.xlu0 %v2639, 32
  %v2694 = vpop.permute.xlu0 %2693
  %2695 = vrot.lane.b32.xlu0 %v2640, 32
  %v2696 = vpop.permute.xlu0 %2695
  %v2705 = vmul.f32 %v2527, %v2682
  %v2706 = vmul.f32 %v2542, %v2684
  %v2707 = vmul.f32 %v2557, %v2686
  %v2708 = vmul.f32 %v2572, %v2688
  %v2709 = vmul.f32 %v2587, %v2690
  %v2710 = vmul.f32 %v2602, %v2692
  %v2711 = vmul.f32 %v2617, %v2694
  %v2712 = vmul.f32 %v2632, %v2696
  %2721 = vrot.lane.b32.xlu0 %v2705, 32
  %v2722 = vpop.permute.xlu0 %2721
  %2723 = vrot.lane.b32.xlu0 %v2706, 32
  %v2724 = vpop.permute.xlu0 %2723
  %2725 = vrot.lane.b32.xlu0 %v2707, 32
  %v2726 = vpop.permute.xlu0 %2725
  %2727 = vrot.lane.b32.xlu0 %v2708, 32
  %v2728 = vpop.permute.xlu0 %2727
  %2729 = vrot.lane.b32.xlu0 %v2709, 32
  %v2730 = vpop.permute.xlu0 %2729
  %2731 = vrot.lane.b32.xlu0 %v2710, 32
  %v2732 = vpop.permute.xlu0 %2731
  %2733 = vrot.lane.b32.xlu0 %v2711, 32
  %v2734 = vpop.permute.xlu0 %2733
  %2735 = vrot.lane.b32.xlu0 %v2712, 32
  %v2736 = vpop.permute.xlu0 %2735
  %v2745 = vadd.f32 %v2665, %v2722
  %v2746 = vadd.f32 %v2666, %v2724
  %v2747 = vadd.f32 %v2667, %v2726
  %v2748 = vadd.f32 %v2668, %v2728
  %v2749 = vadd.f32 %v2669, %v2730
  %v2750 = vadd.f32 %v2670, %v2732
  %v2751 = vadd.f32 %v2671, %v2734
  %v2752 = vadd.f32 %v2672, %v2736
  %v2753 = vtanh.pop %v2745
  %v2754 = vtanh.pop %v2746
  %v2755 = vtanh.pop %v2747
  %v2756 = vtanh.pop %v2748
  %v2757 = vtanh.pop %v2749
  %v2758 = vtanh.pop %v2750
  %v2759 = vtanh.pop %v2751
  %v2760 = vtanh.pop %v2752
  %2769 = vrot.lane.b32.xlu0 %v2753, 32
  %v2770 = vpop.permute.xlu0 %2769
  %2771 = vrot.lane.b32.xlu0 %v2754, 32
  %v2772 = vpop.permute.xlu0 %2771
  %2773 = vrot.lane.b32.xlu0 %v2755, 32
  %v2774 = vpop.permute.xlu0 %2773
  %2775 = vrot.lane.b32.xlu0 %v2756, 32
  %v2776 = vpop.permute.xlu0 %2775
  %2777 = vrot.lane.b32.xlu0 %v2757, 32
  %v2778 = vpop.permute.xlu0 %2777
  %2779 = vrot.lane.b32.xlu0 %v2758, 32
  %v2780 = vpop.permute.xlu0 %2779
  %2781 = vrot.lane.b32.xlu0 %v2759, 32
  %v2782 = vpop.permute.xlu0 %2781
  %2783 = vrot.lane.b32.xlu0 %v2760, 32
  %v2784 = vpop.permute.xlu0 %2783
  %v2793 = vmul.f32 %v2527, %v2770
  %v2794 = vmul.f32 %v2542, %v2772
  %v2795 = vmul.f32 %v2557, %v2774
  %v2796 = vmul.f32 %v2572, %v2776
  %v2797 = vmul.f32 %v2587, %v2778
  %v2798 = vmul.f32 %v2602, %v2780
  %v2799 = vmul.f32 %v2617, %v2782
  %v2800 = vmul.f32 %v2632, %v2784
  %v2809 = vrot.slane %v2793, 6
  %v2810 = vrot.slane %v2794, 5
  %v2811 = vsel %vm463, %v2810, %v2809
  %v2812 = vrot.slane %v2795, 4
  %v2813 = vsel %vm466, %v2812, %v2811
  %v2814 = vrot.slane %v2796, 3
  %v2815 = vsel %vm469, %v2814, %v2813
  %v2816 = vrot.slane %v2797, 2
  %v2817 = vsel %vm472, %v2816, %v2815
  %v2818 = vrot.slane %v2798, 1
  %v2819 = vsel %vm475, %v2818, %v2817
  %v2820 = vsel %vm478, %v2799, %v2819
  %v2821 = vrot.slane %v2800, 7
  %v2822 = vsel %vm481, %v2821, %v2820
  %2823 = vrot.lane.b32.xlu0 %v2822, 64
  %v2824 = vpop.permute.xlu0 %2823
  %v2825 = vsel %vm110, %v2824, 0
  %2827 = vmatpush.msra.mxu0 0.0
  %2828 = vmatpush.msra.mxu0 0.0
  %2829 = vmatpush.msra.mxu0 0.0
  %2830 = vmatpush.msra.mxu0 0.0
  %2831 = vmatpush.msra.mxu0 0.0
  %2832 = vmatpush.msra.mxu0 0.0
  %2833 = vmatpush.msra.mxu0 0.0
  %2834 = vmatpush.msra.mxu0 0.0
  %2835 = vmatpush.msra.mxu0 0.0
  %2836 = vmatpush.msra.mxu0 0.0
  %2837 = vmatpush.msra.mxu0 0.0
  %2838 = vmatpush.msra.mxu0 0.0
  %2839 = vmatpush.msra.mxu0 %v109
  %2840 = vmatpush.msra.mxu0 %v108
  %2841 = vmatpush.msra.mxu0 %v107
  %2842 = vmatpush.msra.mxu0 %v106
  %2843 = vmatmul.f32.gmra.mxu0 %v2825
  %v2844 = vpop.f32.mrf.mxu0
  %v2845 = vadd.f32 0.0, %v2844
  %2846 = vdwg.mxu0
  %v2848 = vrot.slane %v2845, 1
  %v2849 = vrot.slane %v2845, 2
  %v2850 = vrot.slane %v2845, 3
  %v2851 = vrot.slane %v2845, 4
  %v2852 = vrot.slane %v2845, 5
  %v2853 = vrot.slane %v2845, 6
  %v2854 = vrot.slane %v2845, 7
  %v2863 = vadd.f32 %v83, %v2848
  %v2864 = vadd.f32 %v86, %v2849
  %v2865 = vadd.f32 %v89, %v2850
  %v2866 = vadd.f32 %v92, %v2851
  %v2867 = vadd.f32 %v95, %v2852
  %v2868 = vadd.f32 %v98, %v2853
  %v2869 = vadd.f32 %v101, %v2854
  %v2870 = vadd.f32 %v104, %v2845
  %v2871 = vxor.u32 %v2863, 2147483648
  %v2872 = vxor.u32 %v2864, 2147483648
  %v2873 = vxor.u32 %v2865, 2147483648
  %v2874 = vxor.u32 %v2866, 2147483648
  %v2875 = vxor.u32 %v2867, 2147483648
  %v2876 = vxor.u32 %v2868, 2147483648
  %v2877 = vxor.u32 %v2869, 2147483648
  %v2878 = vxor.u32 %v2870, 2147483648
  %v2879 = vmul.f32 %v2871, 1.442695
  %v2880 = vpow.pop %v2879
  %v2881 = vmul.f32 %v2872, 1.442695
  %v2882 = vpow.pop %v2881
  %v2883 = vmul.f32 %v2873, 1.442695
  %v2884 = vpow.pop %v2883
  %v2885 = vmul.f32 %v2874, 1.442695
  %v2886 = vpow.pop %v2885
  %v2887 = vmul.f32 %v2875, 1.442695
  %v2888 = vpow.pop %v2887
  %v2889 = vmul.f32 %v2876, 1.442695
  %v2890 = vpow.pop %v2889
  %v2891 = vmul.f32 %v2877, 1.442695
  %v2892 = vpow.pop %v2891
  %v2893 = vmul.f32 %v2878, 1.442695
  %v2894 = vpow.pop %v2893
  %v2895 = vadd.f32 %v2880, 1.0
  %v2896 = vadd.f32 %v2882, 1.0
  %v2897 = vadd.f32 %v2884, 1.0
  %v2898 = vadd.f32 %v2886, 1.0
  %v2899 = vadd.f32 %v2888, 1.0
  %v2900 = vadd.f32 %v2890, 1.0
  %v2901 = vadd.f32 %v2892, 1.0
  %v2902 = vadd.f32 %v2894, 1.0
  %v2903 = vrcp.pop %v2895
  %v2904 = vmul.f32 %v2895, %v2903
  %v2905 = vsub.f32 1.0, %v2904
  %v2906 = vmul.f32 %v2903, %v2905
  %v2907 = vadd.f32 %v2903, %v2906
  %vm2908 = vweird.f32 %v2895
  %vm2909 = vweird.f32 %v2903
  %vm2910 = vmor %vm2908, %vm2909
  %v2911 = vsel %vm2910, %v2903, %v2907
  %v2912 = vand.u32 2147483647, %v2895
  %vm2913 = vcmp.eq.f32.partialorder %v2912, 8.507059e+37
  %v2914 = vand.u32 %v2895, 2147483648
  %v2915 = vor.u32 1.1754944e-38, %v2914
  %v2916 = vsel %vm2913, %v2915, %v2911
  %v2917 = vmul.f32 1.0, %v2916
  %v2918 = vrcp.pop %v2896
  %v2919 = vmul.f32 %v2896, %v2918
  %v2920 = vsub.f32 1.0, %v2919
  %v2921 = vmul.f32 %v2918, %v2920
  %v2922 = vadd.f32 %v2918, %v2921
  %vm2923 = vweird.f32 %v2896
  %vm2924 = vweird.f32 %v2918
  %vm2925 = vmor %vm2923, %vm2924
  %v2926 = vsel %vm2925, %v2918, %v2922
  %v2927 = vand.u32 2147483647, %v2896
  %vm2928 = vcmp.eq.f32.partialorder %v2927, 8.507059e+37
  %v2929 = vand.u32 %v2896, 2147483648
  %v2930 = vor.u32 1.1754944e-38, %v2929
  %v2931 = vsel %vm2928, %v2930, %v2926
  %v2932 = vmul.f32 1.0, %v2931
  %v2933 = vrcp.pop %v2897
  %v2934 = vmul.f32 %v2897, %v2933
  %v2935 = vsub.f32 1.0, %v2934
  %v2936 = vmul.f32 %v2933, %v2935
  %v2937 = vadd.f32 %v2933, %v2936
  %vm2938 = vweird.f32 %v2897
  %vm2939 = vweird.f32 %v2933
  %vm2940 = vmor %vm2938, %vm2939
  %v2941 = vsel %vm2940, %v2933, %v2937
  %v2942 = vand.u32 2147483647, %v2897
  %vm2943 = vcmp.eq.f32.partialorder %v2942, 8.507059e+37
  %v2944 = vand.u32 %v2897, 2147483648
  %v2945 = vor.u32 1.1754944e-38, %v2944
  %v2946 = vsel %vm2943, %v2945, %v2941
  %v2947 = vmul.f32 1.0, %v2946
  %v2948 = vrcp.pop %v2898
  %v2949 = vmul.f32 %v2898, %v2948
  %v2950 = vsub.f32 1.0, %v2949
  %v2951 = vmul.f32 %v2948, %v2950
  %v2952 = vadd.f32 %v2948, %v2951
  %vm2953 = vweird.f32 %v2898
  %vm2954 = vweird.f32 %v2948
  %vm2955 = vmor %vm2953, %vm2954
  %v2956 = vsel %vm2955, %v2948, %v2952
  %v2957 = vand.u32 2147483647, %v2898
  %vm2958 = vcmp.eq.f32.partialorder %v2957, 8.507059e+37
  %v2959 = vand.u32 %v2898, 2147483648
  %v2960 = vor.u32 1.1754944e-38, %v2959
  %v2961 = vsel %vm2958, %v2960, %v2956
  %v2962 = vmul.f32 1.0, %v2961
  %v2963 = vrcp.pop %v2899
  %v2964 = vmul.f32 %v2899, %v2963
  %v2965 = vsub.f32 1.0, %v2964
  %v2966 = vmul.f32 %v2963, %v2965
  %v2967 = vadd.f32 %v2963, %v2966
  %vm2968 = vweird.f32 %v2899
  %vm2969 = vweird.f32 %v2963
  %vm2970 = vmor %vm2968, %vm2969
  %v2971 = vsel %vm2970, %v2963, %v2967
  %v2972 = vand.u32 2147483647, %v2899
  %vm2973 = vcmp.eq.f32.partialorder %v2972, 8.507059e+37
  %v2974 = vand.u32 %v2899, 2147483648
  %v2975 = vor.u32 1.1754944e-38, %v2974
  %v2976 = vsel %vm2973, %v2975, %v2971
  %v2977 = vmul.f32 1.0, %v2976
  %v2978 = vrcp.pop %v2900
  %v2979 = vmul.f32 %v2900, %v2978
  %v2980 = vsub.f32 1.0, %v2979
  %v2981 = vmul.f32 %v2978, %v2980
  %v2982 = vadd.f32 %v2978, %v2981
  %vm2983 = vweird.f32 %v2900
  %vm2984 = vweird.f32 %v2978
  %vm2985 = vmor %vm2983, %vm2984
  %v2986 = vsel %vm2985, %v2978, %v2982
  %v2987 = vand.u32 2147483647, %v2900
  %vm2988 = vcmp.eq.f32.partialorder %v2987, 8.507059e+37
  %v2989 = vand.u32 %v2900, 2147483648
  %v2990 = vor.u32 1.1754944e-38, %v2989
  %v2991 = vsel %vm2988, %v2990, %v2986
  %v2992 = vmul.f32 1.0, %v2991
  %v2993 = vrcp.pop %v2901
  %v2994 = vmul.f32 %v2901, %v2993
  %v2995 = vsub.f32 1.0, %v2994
  %v2996 = vmul.f32 %v2993, %v2995
  %v2997 = vadd.f32 %v2993, %v2996
  %vm2998 = vweird.f32 %v2901
  %vm2999 = vweird.f32 %v2993
  %vm3000 = vmor %vm2998, %vm2999
  %v3001 = vsel %vm3000, %v2993, %v2997
  %v3002 = vand.u32 2147483647, %v2901
  %vm3003 = vcmp.eq.f32.partialorder %v3002, 8.507059e+37
  %v3004 = vand.u32 %v2901, 2147483648
  %v3005 = vor.u32 1.1754944e-38, %v3004
  %v3006 = vsel %vm3003, %v3005, %v3001
  %v3007 = vmul.f32 1.0, %v3006
  %v3008 = vrcp.pop %v2902
  %v3009 = vmul.f32 %v2902, %v3008
  %v3010 = vsub.f32 1.0, %v3009
  %v3011 = vmul.f32 %v3008, %v3010
  %v3012 = vadd.f32 %v3008, %v3011
  %vm3013 = vweird.f32 %v2902
  %vm3014 = vweird.f32 %v3008
  %vm3015 = vmor %vm3013, %vm3014
  %v3016 = vsel %vm3015, %v3008, %v3012
  %v3017 = vand.u32 2147483647, %v2902
  %vm3018 = vcmp.eq.f32.partialorder %v3017, 8.507059e+37
  %v3019 = vand.u32 %v2902, 2147483648
  %v3020 = vor.u32 1.1754944e-38, %v3019
  %v3021 = vsel %vm3018, %v3020, %v3016
  %v3022 = vmul.f32 1.0, %v3021
  %v3023 = vtanh.pop %v2863
  %v3024 = vtanh.pop %v2864
  %v3025 = vtanh.pop %v2865
  %v3026 = vtanh.pop %v2866
  %v3027 = vtanh.pop %v2867
  %v3028 = vtanh.pop %v2868
  %v3029 = vtanh.pop %v2869
  %v3030 = vtanh.pop %v2870
  %v3039 = vrot.slane %v2745, 7
  %v3040 = vrot.slane %v2746, 7
  %v3041 = vrot.slane %v2747, 7
  %v3042 = vrot.slane %v2748, 7
  %v3043 = vrot.slane %v2749, 7
  %v3044 = vrot.slane %v2750, 7
  %v3045 = vrot.slane %v2751, 7
  %v3046 = vrot.slane %v2752, 7
  %v3055 = vmul.f32 %v2917, %v3039
  %v3056 = vmul.f32 %v2932, %v3040
  %v3057 = vmul.f32 %v2947, %v3041
  %v3058 = vmul.f32 %v2962, %v3042
  %v3059 = vmul.f32 %v2977, %v3043
  %v3060 = vmul.f32 %v2992, %v3044
  %v3061 = vmul.f32 %v3007, %v3045
  %v3062 = vmul.f32 %v3022, %v3046
  %3071 = vrot.lane.b32.xlu0 %v3023, 32
  %v3072 = vpop.permute.xlu0 %3071
  %3073 = vrot.lane.b32.xlu0 %v3024, 32
  %v3074 = vpop.permute.xlu0 %3073
  %3075 = vrot.lane.b32.xlu0 %v3025, 32
  %v3076 = vpop.permute.xlu0 %3075
  %3077 = vrot.lane.b32.xlu0 %v3026, 32
  %v3078 = vpop.permute.xlu0 %3077
  %3079 = vrot.lane.b32.xlu0 %v3027, 32
  %v3080 = vpop.permute.xlu0 %3079
  %3081 = vrot.lane.b32.xlu0 %v3028, 32
  %v3082 = vpop.permute.xlu0 %3081
  %3083 = vrot.lane.b32.xlu0 %v3029, 32
  %v3084 = vpop.permute.xlu0 %3083
  %3085 = vrot.lane.b32.xlu0 %v3030, 32
  %v3086 = vpop.permute.xlu0 %3085
  %v3095 = vmul.f32 %v2917, %v3072
  %v3096 = vmul.f32 %v2932, %v3074
  %v3097 = vmul.f32 %v2947, %v3076
  %v3098 = vmul.f32 %v2962, %v3078
  %v3099 = vmul.f32 %v2977, %v3080
  %v3100 = vmul.f32 %v2992, %v3082
  %v3101 = vmul.f32 %v3007, %v3084
  %v3102 = vmul.f32 %v3022, %v3086
  %3111 = vrot.lane.b32.xlu0 %v3095, 32
  %v3112 = vpop.permute.xlu0 %3111
  %3113 = vrot.lane.b32.xlu0 %v3096, 32
  %v3114 = vpop.permute.xlu0 %3113
  %3115 = vrot.lane.b32.xlu0 %v3097, 32
  %v3116 = vpop.permute.xlu0 %3115
  %3117 = vrot.lane.b32.xlu0 %v3098, 32
  %v3118 = vpop.permute.xlu0 %3117
  %3119 = vrot.lane.b32.xlu0 %v3099, 32
  %v3120 = vpop.permute.xlu0 %3119
  %3121 = vrot.lane.b32.xlu0 %v3100, 32
  %v3122 = vpop.permute.xlu0 %3121
  %3123 = vrot.lane.b32.xlu0 %v3101, 32
  %v3124 = vpop.permute.xlu0 %3123
  %3125 = vrot.lane.b32.xlu0 %v3102, 32
  %v3126 = vpop.permute.xlu0 %3125
  %v3135 = vadd.f32 %v3055, %v3112
  %v3136 = vadd.f32 %v3056, %v3114
  %v3137 = vadd.f32 %v3057, %v3116
  %v3138 = vadd.f32 %v3058, %v3118
  %v3139 = vadd.f32 %v3059, %v3120
  %v3140 = vadd.f32 %v3060, %v3122
  %v3141 = vadd.f32 %v3061, %v3124
  %v3142 = vadd.f32 %v3062, %v3126
  %v3143 = vtanh.pop %v3135
  %v3144 = vtanh.pop %v3136
  %v3145 = vtanh.pop %v3137
  %v3146 = vtanh.pop %v3138
  %v3147 = vtanh.pop %v3139
  %v3148 = vtanh.pop %v3140
  %v3149 = vtanh.pop %v3141
  %v3150 = vtanh.pop %v3142
  %3159 = vrot.lane.b32.xlu0 %v3143, 32
  %v3160 = vpop.permute.xlu0 %3159
  %3161 = vrot.lane.b32.xlu0 %v3144, 32
  %v3162 = vpop.permute.xlu0 %3161
  %3163 = vrot.lane.b32.xlu0 %v3145, 32
  %v3164 = vpop.permute.xlu0 %3163
  %3165 = vrot.lane.b32.xlu0 %v3146, 32
  %v3166 = vpop.permute.xlu0 %3165
  %3167 = vrot.lane.b32.xlu0 %v3147, 32
  %v3168 = vpop.permute.xlu0 %3167
  %3169 = vrot.lane.b32.xlu0 %v3148, 32
  %v3170 = vpop.permute.xlu0 %3169
  %3171 = vrot.lane.b32.xlu0 %v3149, 32
  %v3172 = vpop.permute.xlu0 %3171
  %3173 = vrot.lane.b32.xlu0 %v3150, 32
  %v3174 = vpop.permute.xlu0 %3173
  %v3183 = vmul.f32 %v2917, %v3160
  %v3184 = vmul.f32 %v2932, %v3162
  %v3185 = vmul.f32 %v2947, %v3164
  %v3186 = vmul.f32 %v2962, %v3166
  %v3187 = vmul.f32 %v2977, %v3168
  %v3188 = vmul.f32 %v2992, %v3170
  %v3189 = vmul.f32 %v3007, %v3172
  %v3190 = vmul.f32 %v3022, %v3174
  %v3191 = vld [vmem:[%s1] sm:$0xff]
  %v3192 = vld [vmem:[%s5] sm:$0xff]
  %v3193 = vld [vmem:[%s5 + $0x8] sm:$0xff]
  %v3194 = vld [vmem:[%s6] sm:$0xff]
  %v3195 = vld [vmem:[%s6 + $0x8] sm:$0xff]
  %v3196 = vld [vmem:[%s6 + $0x10] sm:$0xff]
  %v3197 = vld [vmem:[%s6 + $0x18] sm:$0xff]
  %v3206 = vrot.slane %v3183, 7
  %v3207 = vrot.slane %v3184, 6
  %v3208 = vsel %vm463, %v3207, %v3206
  %v3209 = vrot.slane %v3185, 5
  %v3210 = vsel %vm466, %v3209, %v3208
  %v3211 = vrot.slane %v3186, 4
  %v3212 = vsel %vm469, %v3211, %v3210
  %v3213 = vrot.slane %v3187, 3
  %v3214 = vsel %vm472, %v3213, %v3212
  %v3215 = vrot.slane %v3188, 2
  %v3216 = vsel %vm475, %v3215, %v3214
  %v3217 = vrot.slane %v3189, 1
  %v3218 = vsel %vm478, %v3217, %v3216
  %v3219 = vsel %vm481, %v3190, %v3218
  %3220 = vrot.lane.b32.xlu0 %v3219, 64
  %v3221 = vpop.permute.xlu0 %3220
  %v3222 = vsel %vm110, %v3221, 0
  %3224 = vmatpush.msra.mxu0 0.0
  %3225 = vmatpush.msra.mxu0 0.0
  %3226 = vmatpush.msra.mxu0 0.0
  %3227 = vmatpush.msra.mxu0 0.0
  %3228 = vmatpush.msra.mxu0 0.0
  %3229 = vmatpush.msra.mxu0 0.0
  %3230 = vmatpush.msra.mxu0 0.0
  %3231 = vmatpush.msra.mxu0 0.0
  %3232 = vmatpush.msra.mxu0 0.0
  %3233 = vmatpush.msra.mxu0 0.0
  %3234 = vmatpush.msra.mxu0 0.0
  %3235 = vmatpush.msra.mxu0 0.0
  %3236 = vmatpush.msra.mxu0 %v3197
  %3237 = vmatpush.msra.mxu0 %v3196
  %3238 = vmatpush.msra.mxu0 %v3195
  %3239 = vmatpush.msra.mxu0 %v3194
  %3240 = vmatmul.f32.gmra.mxu0 %v3222
  %v3241 = vpop.f32.mrf.mxu0
  %v3242 = vadd.f32 0.0, %v3241
  %3243 = vdwg.mxu0
  %v3245 = vsel %vm40, %v3191, 0
  %3247 = vmatpush.msra.mxu0 0.0
  %3248 = vmatpush.msra.mxu0 0.0
  %3249 = vmatpush.msra.mxu0 0.0
  %3250 = vmatpush.msra.mxu0 0.0
  %3251 = vmatpush.msra.mxu0 0.0
  %3252 = vmatpush.msra.mxu0 0.0
  %3253 = vmatpush.msra.mxu0 0.0
  %3254 = vmatpush.msra.mxu0 0.0
  %3255 = vmatpush.msra.mxu0 0.0
  %3256 = vmatpush.msra.mxu0 0.0
  %3257 = vmatpush.msra.mxu0 0.0
  %3258 = vmatpush.msra.mxu0 0.0
  %3259 = vmatpush.msra.mxu0 0.0
  %3260 = vmatpush.msra.mxu0 0.0
  %3261 = vmatpush.msra.mxu0 %v3193
  %3262 = vmatpush.msra.mxu0 %v3192
  %3263 = vmatmul.f32.gmra.mxu0 %v3245
  %v3264 = vpop.f32.mrf.mxu0
  %v3265 = vadd.f32 %v3242, %v3264
  %3266 = vdwg.mxu0
  %v3267 = vmax.f32 %v3265, 0.0
  %3268 = vst [vmem:[%s7] sm:$0xff] %v3267
  // Predicated region
  $region30: #{lstm_aggregator.1} parent=0 // pred_check
    _
  $region31: #{lstm_aggregator.1} parent=0 // pred_check_branch
    %3270 = sbr.rel (0) target = $region33
  $region32: #{lstm_aggregator.1} parent=0 // pred_region
    _
  $region33: #{lstm_aggregator.1} parent=0 // pred_fallthru
    _
  // Predicated region
  $region34: #{lstm_aggregator.1} parent=0 // pred_check
    _
  $region35: #{lstm_aggregator.1} parent=0 // pred_check_branch
    %3272 = sbr.rel (0) target = $region37
  $region36: #{lstm_aggregator.1} parent=0 // pred_region
    _
  $region37: #{lstm_aggregator.1} parent=0 // pred_fallthru
    _

</llo_original>
